<compile_context>
chip_gen: v7x
topology: tpu7x:2x2x1
jax: 0.10.0
libtpu: 0.0.40
codegen_flags: <defaults>
</compile_context>

<pallas_src>
import jax
import jax.numpy as jnp
from jax import lax
from jax.experimental import pallas as pl


# ----------------------------- model sizes ---------------------------------
SRC_VOCAB = 50
TGT_VOCAB = 48
EMB = 32
HID = 32
SRC_LEN = 7
MAX_LEN = 8          # target sentence length
BATCH = 2
SOS_IDX = 2

N_DEC = MAX_LEN - 1          # teacher-forcing decoder steps
V_PAD = 128                  # blob / logits lane width (lane-dense stores)
OUT_ROWS = 16                # N_DEC*BATCH=14 padded to full sublane tiles

# ---- packed-operand layout (all sections start at 8-row-aligned offsets) ---
SRC_ROWS = 56                # enc folded table rows (50 padded to 56)
TGT_ROWS = 48                # dec folded table rows
ENC_TBL_OFF = 0                                  # [56, 128]
ENC_WH_OFF = ENC_TBL_OFF + SRC_ROWS              # [32, 128] @ 56
DEC_TBL_OFF = ENC_WH_OFF + HID                   # [48, 128] @ 88
DEC_WH_OFF = DEC_TBL_OFF + TGT_ROWS              # [32, 128] @ 136
WO_OFF = DEC_WH_OFF + HID                        # [32, 128] @ 168
BIAS_OFF = WO_OFF + HID                          # [ 8, 128] @ 200
BLOB_ROWS = BIAS_OFF + 8                         # 208

SRC_IDS_OFF = 0
TGT_IDS_OFF = 16
IDS_ROWS = 32


# ------------------------------ fused kernel --------------------------------
def _seq2seq_kernel(ids_ref, blob_ref, out_ref):
    f32 = jnp.float32
    bf16 = jnp.bfloat16

    ids = ids_ref[...]                                               # [32, 1]

    # ---- packed parameter views (8-row aligned, full 128-lane rows) --------
    enc_tbl = blob_ref[ENC_TBL_OFF:ENC_TBL_OFF + SRC_ROWS, :]        # [56,128]
    enc_wh = blob_ref[ENC_WH_OFF:ENC_WH_OFF + HID, :].astype(bf16)   # [32,128]
    dec_tbl = blob_ref[DEC_TBL_OFF:DEC_TBL_OFF + TGT_ROWS, :]        # [48,128]
    dec_wh = blob_ref[DEC_WH_OFF:DEC_WH_OFF + HID, :].astype(bf16)   # [32,128]
    wo = blob_ref[WO_OFF:WO_OFF + HID, :]                            # [32,128]
    biases = blob_ref[BIAS_OFF:BIAS_OFF + 8, :]                      # [ 8,128]
    enc_bi = biases[0:1, :]
    enc_bhn = biases[1:2, :HID]
    dec_bi = biases[2:3, :]
    dec_bhn = biases[3:4, :HID]
    bo = biases[4:5, :]

    # ---- embeddings folded into input projections: one_hot @ (E @ W_i) -----
    src_ids = ids[SRC_IDS_OFF:SRC_IDS_OFF + SRC_LEN * BATCH]          # [14,1]
    src_oh = (src_ids == lax.broadcasted_iota(
        jnp.int32, (SRC_LEN * BATCH, SRC_ROWS), 1)).astype(f32)
    enc_gi = jnp.dot(src_oh, enc_tbl,
                     preferred_element_type=f32) + enc_bi             # [14,128]

    tgt_ids = ids[TGT_IDS_OFF:TGT_IDS_OFF + N_DEC * BATCH]            # [14,1]
    tgt_oh = (tgt_ids == lax.broadcasted_iota(
        jnp.int32, (N_DEC * BATCH, TGT_ROWS), 1)).astype(f32)
    dec_gi = jnp.dot(tgt_oh, dec_tbl,
                     preferred_element_type=f32) + dec_bi             # [14,128]

    def gru_step(gi, h, wh_bf, bhn):
        # PyTorch nn.GRU:  r = s(i_r+h_r), z = s(i_z+h_z),
        #                  n = tanh(i_n + r*(W_hn h + b_hn)),  h' = (1-z)n + z h
        # Recurrent matmul takes bf16 MXU operands; gate math stays f32.
        gh = jnp.dot(h.astype(jnp.bfloat16), wh_bf,
                     preferred_element_type=f32)                      # [B,128]
        r = jax.nn.sigmoid(gi[:, :HID] + gh[:, :HID])
        z = jax.nn.sigmoid(gi[:, HID:2 * HID] + gh[:, HID:2 * HID])
        n = jnp.tanh(gi[:, 2 * HID:3 * HID] + r * (gh[:, 2 * HID:3 * HID] + bhn))
        return (1.0 - z) * n + z * h

    # ---- encoder recurrence (serial, fully unrolled; h lives in vregs) -----
    h = jnp.zeros((BATCH, HID), f32)
    for t in range(SRC_LEN):
        h = gru_step(enc_gi[t * BATCH:(t + 1) * BATCH, :], h, enc_wh, enc_bhn)

    # ---- decoder recurrence; hidden states stay in a vreg accumulator ------
    row_iota = lax.broadcasted_iota(jnp.int32, (OUT_ROWS, HID), 0)
    hs_acc = jnp.zeros((OUT_ROWS, HID), f32)
    for t in range(N_DEC):
        h = gru_step(dec_gi[t * BATCH:(t + 1) * BATCH, :], h, dec_wh, dec_bhn)
        for b in range(BATCH):
            hs_acc = jnp.where(row_iota == (t * BATCH + b),
                               h[b:b + 1, :], hs_acc)

    # ---- single sublane/lane-dense output projection + store ---------------
    out_ref[...] = jnp.dot(hs_acc, wo, preferred_element_type=f32) + bo


def _seq2seq_pallas(ids, blob):
    # No grid: whole (tiny) problem lives in VMEM for a single invocation;
    # exactly two input DMAs (ids + packed parameter blob), one output DMA.
    return pl.pallas_call(
        _seq2seq_kernel,
        out_shape=jax.ShapeDtypeStruct((OUT_ROWS, V_PAD), jnp.float32),
    )(ids, blob)


# ------------------------------ parameters ----------------------------------
def init_params(key):
    ks = jax.random.split(key, 11)
    s = 0.1
    return {
        "enc_emb": s * jax.random.normal(ks[0], (SRC_VOCAB, EMB), jnp.float32),
        "enc_wi":  s * jax.random.normal(ks[1], (EMB, 3 * HID), jnp.float32),
        "enc_wh":  s * jax.random.normal(ks[2], (HID, 3 * HID), jnp.float32),
        "enc_bi":  s * jax.random.normal(ks[3], (1, 3 * HID), jnp.float32),
        "enc_bh":  s * jax.random.normal(ks[4], (1, 3 * HID), jnp.float32),
        "dec_emb": s * jax.random.normal(ks[5], (TGT_VOCAB, EMB), jnp.float32),
        "dec_wi":  s * jax.random.normal(ks[6], (EMB, 3 * HID), jnp.float32),
        "dec_wh":  s * jax.random.normal(ks[7], (HID, 3 * HID), jnp.float32),
        "dec_bi":  s * jax.random.normal(ks[8], (1, 3 * HID), jnp.float32),
        "dec_bh":  s * jax.random.normal(ks[9], (1, 3 * HID), jnp.float32),
        "dec_wo":  s * jax.random.normal(ks[10], (HID, TGT_VOCAB), jnp.float32),
        "dec_bo":  jnp.zeros((1, TGT_VOCAB), jnp.float32),
    }


# ------------------------------ full forward --------------------------------
@jax.jit
def seq2seq_forward(params, source, target):
    """source: [S, B] int32 ; target: [T, B] int32
       returns outputs: [T, B, TGT_VOCAB] float32 (training branch)."""
    S, B = source.shape
    T = target.shape[0]

    # ---- pack token ids into one int32 [32,1] array (8-row aligned parts) --
    ids = jnp.zeros((IDS_ROWS, 1), jnp.int32)
    ids = ids.at[SRC_IDS_OFF:SRC_IDS_OFF + S * B, 0].set(
        source.reshape(-1).astype(jnp.int32))
    ids = ids.at[TGT_IDS_OFF:TGT_IDS_OFF + (T - 1) * B, 0].set(
        target[:-1].reshape(-1).astype(jnp.int32))

    # ---- fold r/z hidden biases into the input bias; keep b_hn separate ----
    def fold_bias(bi, bh):
        bi_adj = jnp.concatenate(
            [bi[:, :2 * HID] + bh[:, :2 * HID], bi[:, 2 * HID:]], axis=1)
        return bi_adj, bh[:, 2 * HID:]

    enc_bi_adj, enc_bhn = fold_bias(params["enc_bi"], params["enc_bh"])
    dec_bi_adj, dec_bhn = fold_bias(params["dec_bi"], params["dec_bh"])

    # ---- fold embedding tables into the input projections ------------------
    enc_tbl = jnp.dot(params["enc_emb"], params["enc_wi"],
                      preferred_element_type=jnp.float32)          # [50, 96]
    dec_tbl = jnp.dot(params["dec_emb"], params["dec_wi"],
                      preferred_element_type=jnp.float32)          # [48, 96]

    # ---- pack all f32 parameters into one [208,128] blob -------------------
    def pad_block(x, rows):
        return jnp.pad(x, ((0, rows - x.shape[0]), (0, V_PAD - x.shape[1])))

    bias_rows = jnp.zeros((8, V_PAD), jnp.float32)
    bias_rows = bias_rows.at[0, :3 * HID].set(enc_bi_adj[0])
    bias_rows = bias_rows.at[1, :HID].set(enc_bhn[0])
    bias_rows = bias_rows.at[2, :3 * HID].set(dec_bi_adj[0])
    bias_rows = bias_rows.at[3, :HID].set(dec_bhn[0])
    bias_rows = bias_rows.at[4, :TGT_VOCAB].set(params["dec_bo"][0])

    blob = jnp.concatenate([
        pad_block(enc_tbl, SRC_ROWS),
        pad_block(params["enc_wh"], HID),
        pad_block(dec_tbl, TGT_ROWS),
        pad_block(params["dec_wh"], HID),
        pad_block(params["dec_wo"], HID),
        bias_rows,
    ], axis=0)                                                     # [208, 128]

    logits_pad = _seq2seq_pallas(ids, blob)                        # [16, 128]
    logits = logits_pad[:N_DEC * B, :TGT_VOCAB].reshape(T - 1, B, TGT_VOCAB)

    # outputs = ones(T, B, V) * <sos>; rows 1..T-1 replaced by decoder logits
    outputs = jnp.full((T, B, TGT_VOCAB), float(SOS_IDX), jnp.float32)
    outputs = outputs.at[1:].set(logits)
    return outputs


# --------------------------- pure-JAX reference ------------------------------
def seq2seq_reference(params, source, target):
    def gru_cell(x, h, wi, wh, bi, bh):
        gi = x @ wi + bi
        gh = h @ wh + bh
        r = jax.nn.sigmoid(gi[:, :HID] + gh[:, :HID])
        z = jax.nn.sigmoid(gi[:, HID:2 * HID] + gh[:, HID:2 * HID])
        n = jnp.tanh(gi[:, 2 * HID:] + r * gh[:, 2 * HID:])
        return (1.0 - z) * n + z * h

    src_emb = jnp.take(params["enc_emb"], source, axis=0)
    h = jnp.zeros((source.shape[1], HID), jnp.float32)
    for t in range(source.shape[0]):
        h = gru_cell(src_emb[t], h, params["enc_wi"], params["enc_wh"],
                     params["enc_bi"], params["enc_bh"])

    T, B = target.shape
    dec_emb = jnp.take(params["dec_emb"], target[:-1], axis=0)
    outputs = jnp.full((T, B, TGT_VOCAB), float(SOS_IDX), jnp.float32)
    for t in range(T - 1):
        h = gru_cell(dec_emb[t], h, params["dec_wi"], params["dec_wh"],
                     params["dec_bi"], params["dec_bh"])
        outputs = outputs.at[t + 1].set(h @ params["dec_wo"] + params["dec_bo"])
    return outputs


# --------------------------------- main --------------------------------------
if __name__ == "__main__":
    key = jax.random.PRNGKey(0)
    pkey, skey, tkey = jax.random.split(key, 3)

    params = init_params(pkey)
    source = jax.random.randint(skey, (SRC_LEN, BATCH), 0, SRC_VOCAB, jnp.int32)
    target = jax.random.randint(tkey, (MAX_LEN, BATCH), 0, TGT_VOCAB, jnp.int32)
    target = target.at[0, :].set(SOS_IDX)   # sentences start with <sos>

    out = seq2seq_forward(params, source, target)
    jax.block_until_ready(out)

    assert out.shape == (MAX_LEN, BATCH, TGT_VOCAB)
    assert out.dtype == jnp.float32
    assert bool(jnp.all(jnp.isfinite(out)))

    ref = seq2seq_reference(params, source, target)
    max_err = float(jnp.max(jnp.abs(out - ref)))
    assert bool(jnp.allclose(out, ref, atol=2e-2, rtol=2e-2)), max_err

    print("KERNEL_OK")
</pallas_src>

<mosaic_0001>
module attributes {stable_mosaic.version = 11 : i64} {
  func.func @_seq2seq_kernel(%arg0: memref<32x1xi32, #tpu.memory_space<vmem>>, %arg1: memref<208x128xf32, #tpu.memory_space<vmem>>, %arg2: memref<16x128xf32, #tpu.memory_space<vmem>>) attributes {dimension_semantics = [], scalar_prefetch = 0 : i64, scratch_operands = 0 : i64, tpu.core_type = #tpu.core_type<tc>} {
    %c0 = arith.constant 0 : index
    %c0_0 = arith.constant 0 : index
    %0 = vector.load %arg0[%c0, %c0_0] : memref<32x1xi32, #tpu.memory_space<vmem>>, vector<32x1xi32>
    %c0_1 = arith.constant 0 : index
    %c0_2 = arith.constant 0 : index
    %1 = vector.load %arg1[%c0_1, %c0_2] : memref<208x128xf32, #tpu.memory_space<vmem>>, vector<56x128xf32>
    %c56 = arith.constant 56 : index
    %c0_3 = arith.constant 0 : index
    %2 = vector.load %arg1[%c56, %c0_3] : memref<208x128xf32, #tpu.memory_space<vmem>>, vector<32x128xf32>
    %3 = arith.truncf %2 : vector<32x128xf32> to vector<32x128xbf16>
    %c88 = arith.constant 88 : index
    %c0_4 = arith.constant 0 : index
    %4 = vector.load %arg1[%c88, %c0_4] : memref<208x128xf32, #tpu.memory_space<vmem>>, vector<48x128xf32>
    %c136 = arith.constant 136 : index
    %c0_5 = arith.constant 0 : index
    %5 = vector.load %arg1[%c136, %c0_5] : memref<208x128xf32, #tpu.memory_space<vmem>>, vector<32x128xf32>
    %6 = arith.truncf %5 : vector<32x128xf32> to vector<32x128xbf16>
    %c168 = arith.constant 168 : index
    %c0_6 = arith.constant 0 : index
    %7 = vector.load %arg1[%c168, %c0_6] : memref<208x128xf32, #tpu.memory_space<vmem>>, vector<32x128xf32>
    %c200 = arith.constant 200 : index
    %c0_7 = arith.constant 0 : index
    %8 = vector.load %arg1[%c200, %c0_7] : memref<208x128xf32, #tpu.memory_space<vmem>>, vector<8x128xf32>
    %9 = vector.extract_strided_slice %8 {offsets = [0, 0], sizes = [1, 128], strides = [1, 1]} : vector<8x128xf32> to vector<1x128xf32>
    %10 = vector.extract_strided_slice %8 {offsets = [1, 0], sizes = [1, 32], strides = [1, 1]} : vector<8x128xf32> to vector<1x32xf32>
    %11 = vector.extract_strided_slice %8 {offsets = [2, 0], sizes = [1, 128], strides = [1, 1]} : vector<8x128xf32> to vector<1x128xf32>
    %12 = vector.extract_strided_slice %8 {offsets = [3, 0], sizes = [1, 32], strides = [1, 1]} : vector<8x128xf32> to vector<1x32xf32>
    %13 = vector.extract_strided_slice %8 {offsets = [4, 0], sizes = [1, 128], strides = [1, 1]} : vector<8x128xf32> to vector<1x128xf32>
    %14 = vector.extract_strided_slice %0 {offsets = [0, 0], sizes = [14, 1], strides = [1, 1]} : vector<32x1xi32> to vector<14x1xi32>
    %15 = tpu.iota {dimensions = array<i32: 1>} : vector<14x56xi32>
    %16 = vector.broadcast %14 : vector<14x1xi32> to vector<14x56xi32>
    %17 = arith.cmpi eq, %16, %15 : vector<14x56xi32>
    %18 = arith.extui %17 : vector<14x56xi1> to vector<14x56xi32>
    %19 = arith.sitofp %18 : vector<14x56xi32> to vector<14x56xf32>
    %cst = arith.constant dense<0.000000e+00> : vector<14x128xf32>
    %20 = tpu.matmul %19, %1, %cst {dimension_numbers = #tpu.dot_dimension_numbers<[1], [0], [0], [1], [0, 0, 1, 1], [], []>} : vector<14x56xf32>, vector<56x128xf32>, vector<14x128xf32> -> vector<14x128xf32>
    %21 = vector.broadcast %9 : vector<1x128xf32> to vector<14x128xf32>
    %22 = arith.addf %20, %21 : vector<14x128xf32>
    %23 = vector.extract_strided_slice %0 {offsets = [16, 0], sizes = [14, 1], strides = [1, 1]} : vector<32x1xi32> to vector<14x1xi32>
    %24 = tpu.iota {dimensions = array<i32: 1>} : vector<14x48xi32>
    %25 = vector.broadcast %23 : vector<14x1xi32> to vector<14x48xi32>
    %26 = arith.cmpi eq, %25, %24 : vector<14x48xi32>
    %27 = arith.extui %26 : vector<14x48xi1> to vector<14x48xi32>
    %28 = arith.sitofp %27 : vector<14x48xi32> to vector<14x48xf32>
    %cst_8 = arith.constant dense<0.000000e+00> : vector<14x128xf32>
    %29 = tpu.matmul %28, %4, %cst_8 {dimension_numbers = #tpu.dot_dimension_numbers<[1], [0], [0], [1], [0, 0, 1, 1], [], []>} : vector<14x48xf32>, vector<48x128xf32>, vector<14x128xf32> -> vector<14x128xf32>
    %30 = vector.broadcast %11 : vector<1x128xf32> to vector<14x128xf32>
    %31 = arith.addf %29, %30 : vector<14x128xf32>
    %cst_9 = arith.constant 0.000000e+00 : f32
    %32 = vector.broadcast %cst_9 : f32 to vector<2x32xf32>
    %33 = vector.extract_strided_slice %22 {offsets = [0, 0], sizes = [2, 128], strides = [1, 1]} : vector<14x128xf32> to vector<2x128xf32>
    %34 = arith.truncf %32 : vector<2x32xf32> to vector<2x32xbf16>
    %cst_10 = arith.constant dense<0.000000e+00> : vector<2x128xf32>
    %35 = tpu.matmul %34, %3, %cst_10 {dimension_numbers = #tpu.dot_dimension_numbers<[1], [0], [0], [1], [0, 0, 1, 1], [], []>} : vector<2x32xbf16>, vector<32x128xbf16>, vector<2x128xf32> -> vector<2x128xf32>
    %36 = vector.extract_strided_slice %33 {offsets = [0, 0], sizes = [2, 32], strides = [1, 1]} : vector<2x128xf32> to vector<2x32xf32>
    %37 = vector.extract_strided_slice %35 {offsets = [0, 0], sizes = [2, 32], strides = [1, 1]} : vector<2x128xf32> to vector<2x32xf32>
    %38 = arith.addf %36, %37 : vector<2x32xf32>
    %39 = arith.negf %38 : vector<2x32xf32>
    %40 = math.exp %39 : vector<2x32xf32>
    %cst_11 = arith.constant 1.000000e+00 : f32
    %41 = vector.broadcast %cst_11 : f32 to vector<2x32xf32>
    %42 = arith.addf %41, %40 : vector<2x32xf32>
    %43 = arith.divf %41, %42 : vector<2x32xf32>
    %44 = vector.extract_strided_slice %33 {offsets = [0, 32], sizes = [2, 32], strides = [1, 1]} : vector<2x128xf32> to vector<2x32xf32>
    %45 = vector.extract_strided_slice %35 {offsets = [0, 32], sizes = [2, 32], strides = [1, 1]} : vector<2x128xf32> to vector<2x32xf32>
    %46 = arith.addf %44, %45 : vector<2x32xf32>
    %47 = arith.negf %46 : vector<2x32xf32>
    %48 = math.exp %47 : vector<2x32xf32>
    %cst_12 = arith.constant 1.000000e+00 : f32
    %49 = vector.broadcast %cst_12 : f32 to vector<2x32xf32>
    %50 = arith.addf %49, %48 : vector<2x32xf32>
    %51 = arith.divf %49, %50 : vector<2x32xf32>
    %52 = vector.extract_strided_slice %33 {offsets = [0, 64], sizes = [2, 32], strides = [1, 1]} : vector<2x128xf32> to vector<2x32xf32>
    %53 = vector.extract_strided_slice %35 {offsets = [0, 64], sizes = [2, 32], strides = [1, 1]} : vector<2x128xf32> to vector<2x32xf32>
    %54 = vector.broadcast %10 : vector<1x32xf32> to vector<2x32xf32>
    %55 = arith.addf %53, %54 : vector<2x32xf32>
    %56 = arith.mulf %43, %55 : vector<2x32xf32>
    %57 = arith.addf %52, %56 : vector<2x32xf32>
    %58 = math.tanh %57 : vector<2x32xf32>
    %cst_13 = arith.constant 1.000000e+00 : f32
    %59 = vector.broadcast %cst_13 : f32 to vector<2x32xf32>
    %60 = arith.subf %59, %51 : vector<2x32xf32>
    %61 = arith.mulf %60, %58 : vector<2x32xf32>
    %62 = arith.mulf %51, %32 : vector<2x32xf32>
    %63 = arith.addf %61, %62 : vector<2x32xf32>
    %64 = vector.extract_strided_slice %22 {offsets = [2, 0], sizes = [2, 128], strides = [1, 1]} : vector<14x128xf32> to vector<2x128xf32>
    %65 = arith.truncf %63 : vector<2x32xf32> to vector<2x32xbf16>
    %cst_14 = arith.constant dense<0.000000e+00> : vector<2x128xf32>
    %66 = tpu.matmul %65, %3, %cst_14 {dimension_numbers = #tpu.dot_dimension_numbers<[1], [0], [0], [1], [0, 0, 1, 1], [], []>} : vector<2x32xbf16>, vector<32x128xbf16>, vector<2x128xf32> -> vector<2x128xf32>
    %67 = vector.extract_strided_slice %64 {offsets = [0, 0], sizes = [2, 32], strides = [1, 1]} : vector<2x128xf32> to vector<2x32xf32>
    %68 = vector.extract_strided_slice %66 {offsets = [0, 0], sizes = [2, 32], strides = [1, 1]} : vector<2x128xf32> to vector<2x32xf32>
    %69 = arith.addf %67, %68 : vector<2x32xf32>
    %70 = arith.negf %69 : vector<2x32xf32>
    %71 = math.exp %70 : vector<2x32xf32>
    %cst_15 = arith.constant 1.000000e+00 : f32
    %72 = vector.broadcast %cst_15 : f32 to vector<2x32xf32>
    %73 = arith.addf %72, %71 : vector<2x32xf32>
    %74 = arith.divf %72, %73 : vector<2x32xf32>
    %75 = vector.extract_strided_slice %64 {offsets = [0, 32], sizes = [2, 32], strides = [1, 1]} : vector<2x128xf32> to vector<2x32xf32>
    %76 = vector.extract_strided_slice %66 {offsets = [0, 32], sizes = [2, 32], strides = [1, 1]} : vector<2x128xf32> to vector<2x32xf32>
    %77 = arith.addf %75, %76 : vector<2x32xf32>
    %78 = arith.negf %77 : vector<2x32xf32>
    %79 = math.exp %78 : vector<2x32xf32>
    %cst_16 = arith.constant 1.000000e+00 : f32
    %80 = vector.broadcast %cst_16 : f32 to vector<2x32xf32>
    %81 = arith.addf %80, %79 : vector<2x32xf32>
    %82 = arith.divf %80, %81 : vector<2x32xf32>
    %83 = vector.extract_strided_slice %64 {offsets = [0, 64], sizes = [2, 32], strides = [1, 1]} : vector<2x128xf32> to vector<2x32xf32>
    %84 = vector.extract_strided_slice %66 {offsets = [0, 64], sizes = [2, 32], strides = [1, 1]} : vector<2x128xf32> to vector<2x32xf32>
    %85 = vector.broadcast %10 : vector<1x32xf32> to vector<2x32xf32>
    %86 = arith.addf %84, %85 : vector<2x32xf32>
    %87 = arith.mulf %74, %86 : vector<2x32xf32>
    %88 = arith.addf %83, %87 : vector<2x32xf32>
    %89 = math.tanh %88 : vector<2x32xf32>
    %cst_17 = arith.constant 1.000000e+00 : f32
    %90 = vector.broadcast %cst_17 : f32 to vector<2x32xf32>
    %91 = arith.subf %90, %82 : vector<2x32xf32>
    %92 = arith.mulf %91, %89 : vector<2x32xf32>
    %93 = arith.mulf %82, %63 : vector<2x32xf32>
    %94 = arith.addf %92, %93 : vector<2x32xf32>
    %95 = vector.extract_strided_slice %22 {offsets = [4, 0], sizes = [2, 128], strides = [1, 1]} : vector<14x128xf32> to vector<2x128xf32>
    %96 = arith.truncf %94 : vector<2x32xf32> to vector<2x32xbf16>
    %cst_18 = arith.constant dense<0.000000e+00> : vector<2x128xf32>
    %97 = tpu.matmul %96, %3, %cst_18 {dimension_numbers = #tpu.dot_dimension_numbers<[1], [0], [0], [1], [0, 0, 1, 1], [], []>} : vector<2x32xbf16>, vector<32x128xbf16>, vector<2x128xf32> -> vector<2x128xf32>
    %98 = vector.extract_strided_slice %95 {offsets = [0, 0], sizes = [2, 32], strides = [1, 1]} : vector<2x128xf32> to vector<2x32xf32>
    %99 = vector.extract_strided_slice %97 {offsets = [0, 0], sizes = [2, 32], strides = [1, 1]} : vector<2x128xf32> to vector<2x32xf32>
    %100 = arith.addf %98, %99 : vector<2x32xf32>
    %101 = arith.negf %100 : vector<2x32xf32>
    %102 = math.exp %101 : vector<2x32xf32>
    %cst_19 = arith.constant 1.000000e+00 : f32
    %103 = vector.broadcast %cst_19 : f32 to vector<2x32xf32>
    %104 = arith.addf %103, %102 : vector<2x32xf32>
    %105 = arith.divf %103, %104 : vector<2x32xf32>
    %106 = vector.extract_strided_slice %95 {offsets = [0, 32], sizes = [2, 32], strides = [1, 1]} : vector<2x128xf32> to vector<2x32xf32>
    %107 = vector.extract_strided_slice %97 {offsets = [0, 32], sizes = [2, 32], strides = [1, 1]} : vector<2x128xf32> to vector<2x32xf32>
    %108 = arith.addf %106, %107 : vector<2x32xf32>
    %109 = arith.negf %108 : vector<2x32xf32>
    %110 = math.exp %109 : vector<2x32xf32>
    %cst_20 = arith.constant 1.000000e+00 : f32
    %111 = vector.broadcast %cst_20 : f32 to vector<2x32xf32>
    %112 = arith.addf %111, %110 : vector<2x32xf32>
    %113 = arith.divf %111, %112 : vector<2x32xf32>
    %114 = vector.extract_strided_slice %95 {offsets = [0, 64], sizes = [2, 32], strides = [1, 1]} : vector<2x128xf32> to vector<2x32xf32>
    %115 = vector.extract_strided_slice %97 {offsets = [0, 64], sizes = [2, 32], strides = [1, 1]} : vector<2x128xf32> to vector<2x32xf32>
    %116 = vector.broadcast %10 : vector<1x32xf32> to vector<2x32xf32>
    %117 = arith.addf %115, %116 : vector<2x32xf32>
    %118 = arith.mulf %105, %117 : vector<2x32xf32>
    %119 = arith.addf %114, %118 : vector<2x32xf32>
    %120 = math.tanh %119 : vector<2x32xf32>
    %cst_21 = arith.constant 1.000000e+00 : f32
    %121 = vector.broadcast %cst_21 : f32 to vector<2x32xf32>
    %122 = arith.subf %121, %113 : vector<2x32xf32>
    %123 = arith.mulf %122, %120 : vector<2x32xf32>
    %124 = arith.mulf %113, %94 : vector<2x32xf32>
    %125 = arith.addf %123, %124 : vector<2x32xf32>
    %126 = vector.extract_strided_slice %22 {offsets = [6, 0], sizes = [2, 128], strides = [1, 1]} : vector<14x128xf32> to vector<2x128xf32>
    %127 = arith.truncf %125 : vector<2x32xf32> to vector<2x32xbf16>
    %cst_22 = arith.constant dense<0.000000e+00> : vector<2x128xf32>
    %128 = tpu.matmul %127, %3, %cst_22 {dimension_numbers = #tpu.dot_dimension_numbers<[1], [0], [0], [1], [0, 0, 1, 1], [], []>} : vector<2x32xbf16>, vector<32x128xbf16>, vector<2x128xf32> -> vector<2x128xf32>
    %129 = vector.extract_strided_slice %126 {offsets = [0, 0], sizes = [2, 32], strides = [1, 1]} : vector<2x128xf32> to vector<2x32xf32>
    %130 = vector.extract_strided_slice %128 {offsets = [0, 0], sizes = [2, 32], strides = [1, 1]} : vector<2x128xf32> to vector<2x32xf32>
    %131 = arith.addf %129, %130 : vector<2x32xf32>
    %132 = arith.negf %131 : vector<2x32xf32>
    %133 = math.exp %132 : vector<2x32xf32>
    %cst_23 = arith.constant 1.000000e+00 : f32
    %134 = vector.broadcast %cst_23 : f32 to vector<2x32xf32>
    %135 = arith.addf %134, %133 : vector<2x32xf32>
    %136 = arith.divf %134, %135 : vector<2x32xf32>
    %137 = vector.extract_strided_slice %126 {offsets = [0, 32], sizes = [2, 32], strides = [1, 1]} : vector<2x128xf32> to vector<2x32xf32>
    %138 = vector.extract_strided_slice %128 {offsets = [0, 32], sizes = [2, 32], strides = [1, 1]} : vector<2x128xf32> to vector<2x32xf32>
    %139 = arith.addf %137, %138 : vector<2x32xf32>
    %140 = arith.negf %139 : vector<2x32xf32>
    %141 = math.exp %140 : vector<2x32xf32>
    %cst_24 = arith.constant 1.000000e+00 : f32
    %142 = vector.broadcast %cst_24 : f32 to vector<2x32xf32>
    %143 = arith.addf %142, %141 : vector<2x32xf32>
    %144 = arith.divf %142, %143 : vector<2x32xf32>
    %145 = vector.extract_strided_slice %126 {offsets = [0, 64], sizes = [2, 32], strides = [1, 1]} : vector<2x128xf32> to vector<2x32xf32>
    %146 = vector.extract_strided_slice %128 {offsets = [0, 64], sizes = [2, 32], strides = [1, 1]} : vector<2x128xf32> to vector<2x32xf32>
    %147 = vector.broadcast %10 : vector<1x32xf32> to vector<2x32xf32>
    %148 = arith.addf %146, %147 : vector<2x32xf32>
    %149 = arith.mulf %136, %148 : vector<2x32xf32>
    %150 = arith.addf %145, %149 : vector<2x32xf32>
    %151 = math.tanh %150 : vector<2x32xf32>
    %cst_25 = arith.constant 1.000000e+00 : f32
    %152 = vector.broadcast %cst_25 : f32 to vector<2x32xf32>
    %153 = arith.subf %152, %144 : vector<2x32xf32>
    %154 = arith.mulf %153, %151 : vector<2x32xf32>
    %155 = arith.mulf %144, %125 : vector<2x32xf32>
    %156 = arith.addf %154, %155 : vector<2x32xf32>
    %157 = vector.extract_strided_slice %22 {offsets = [8, 0], sizes = [2, 128], strides = [1, 1]} : vector<14x128xf32> to vector<2x128xf32>
    %158 = arith.truncf %156 : vector<2x32xf32> to vector<2x32xbf16>
    %cst_26 = arith.constant dense<0.000000e+00> : vector<2x128xf32>
    %159 = tpu.matmul %158, %3, %cst_26 {dimension_numbers = #tpu.dot_dimension_numbers<[1], [0], [0], [1], [0, 0, 1, 1], [], []>} : vector<2x32xbf16>, vector<32x128xbf16>, vector<2x128xf32> -> vector<2x128xf32>
    %160 = vector.extract_strided_slice %157 {offsets = [0, 0], sizes = [2, 32], strides = [1, 1]} : vector<2x128xf32> to vector<2x32xf32>
    %161 = vector.extract_strided_slice %159 {offsets = [0, 0], sizes = [2, 32], strides = [1, 1]} : vector<2x128xf32> to vector<2x32xf32>
    %162 = arith.addf %160, %161 : vector<2x32xf32>
    %163 = arith.negf %162 : vector<2x32xf32>
    %164 = math.exp %163 : vector<2x32xf32>
    %cst_27 = arith.constant 1.000000e+00 : f32
    %165 = vector.broadcast %cst_27 : f32 to vector<2x32xf32>
    %166 = arith.addf %165, %164 : vector<2x32xf32>
    %167 = arith.divf %165, %166 : vector<2x32xf32>
    %168 = vector.extract_strided_slice %157 {offsets = [0, 32], sizes = [2, 32], strides = [1, 1]} : vector<2x128xf32> to vector<2x32xf32>
    %169 = vector.extract_strided_slice %159 {offsets = [0, 32], sizes = [2, 32], strides = [1, 1]} : vector<2x128xf32> to vector<2x32xf32>
    %170 = arith.addf %168, %169 : vector<2x32xf32>
    %171 = arith.negf %170 : vector<2x32xf32>
    %172 = math.exp %171 : vector<2x32xf32>
    %cst_28 = arith.constant 1.000000e+00 : f32
    %173 = vector.broadcast %cst_28 : f32 to vector<2x32xf32>
    %174 = arith.addf %173, %172 : vector<2x32xf32>
    %175 = arith.divf %173, %174 : vector<2x32xf32>
    %176 = vector.extract_strided_slice %157 {offsets = [0, 64], sizes = [2, 32], strides = [1, 1]} : vector<2x128xf32> to vector<2x32xf32>
    %177 = vector.extract_strided_slice %159 {offsets = [0, 64], sizes = [2, 32], strides = [1, 1]} : vector<2x128xf32> to vector<2x32xf32>
    %178 = vector.broadcast %10 : vector<1x32xf32> to vector<2x32xf32>
    %179 = arith.addf %177, %178 : vector<2x32xf32>
    %180 = arith.mulf %167, %179 : vector<2x32xf32>
    %181 = arith.addf %176, %180 : vector<2x32xf32>
    %182 = math.tanh %181 : vector<2x32xf32>
    %cst_29 = arith.constant 1.000000e+00 : f32
    %183 = vector.broadcast %cst_29 : f32 to vector<2x32xf32>
    %184 = arith.subf %183, %175 : vector<2x32xf32>
    %185 = arith.mulf %184, %182 : vector<2x32xf32>
    %186 = arith.mulf %175, %156 : vector<2x32xf32>
    %187 = arith.addf %185, %186 : vector<2x32xf32>
    %188 = vector.extract_strided_slice %22 {offsets = [10, 0], sizes = [2, 128], strides = [1, 1]} : vector<14x128xf32> to vector<2x128xf32>
    %189 = arith.truncf %187 : vector<2x32xf32> to vector<2x32xbf16>
    %cst_30 = arith.constant dense<0.000000e+00> : vector<2x128xf32>
    %190 = tpu.matmul %189, %3, %cst_30 {dimension_numbers = #tpu.dot_dimension_numbers<[1], [0], [0], [1], [0, 0, 1, 1], [], []>} : vector<2x32xbf16>, vector<32x128xbf16>, vector<2x128xf32> -> vector<2x128xf32>
    %191 = vector.extract_strided_slice %188 {offsets = [0, 0], sizes = [2, 32], strides = [1, 1]} : vector<2x128xf32> to vector<2x32xf32>
    %192 = vector.extract_strided_slice %190 {offsets = [0, 0], sizes = [2, 32], strides = [1, 1]} : vector<2x128xf32> to vector<2x32xf32>
    %193 = arith.addf %191, %192 : vector<2x32xf32>
    %194 = arith.negf %193 : vector<2x32xf32>
    %195 = math.exp %194 : vector<2x32xf32>
    %cst_31 = arith.constant 1.000000e+00 : f32
    %196 = vector.broadcast %cst_31 : f32 to vector<2x32xf32>
    %197 = arith.addf %196, %195 : vector<2x32xf32>
    %198 = arith.divf %196, %197 : vector<2x32xf32>
    %199 = vector.extract_strided_slice %188 {offsets = [0, 32], sizes = [2, 32], strides = [1, 1]} : vector<2x128xf32> to vector<2x32xf32>
    %200 = vector.extract_strided_slice %190 {offsets = [0, 32], sizes = [2, 32], strides = [1, 1]} : vector<2x128xf32> to vector<2x32xf32>
    %201 = arith.addf %199, %200 : vector<2x32xf32>
    %202 = arith.negf %201 : vector<2x32xf32>
    %203 = math.exp %202 : vector<2x32xf32>
    %cst_32 = arith.constant 1.000000e+00 : f32
    %204 = vector.broadcast %cst_32 : f32 to vector<2x32xf32>
    %205 = arith.addf %204, %203 : vector<2x32xf32>
    %206 = arith.divf %204, %205 : vector<2x32xf32>
    %207 = vector.extract_strided_slice %188 {offsets = [0, 64], sizes = [2, 32], strides = [1, 1]} : vector<2x128xf32> to vector<2x32xf32>
    %208 = vector.extract_strided_slice %190 {offsets = [0, 64], sizes = [2, 32], strides = [1, 1]} : vector<2x128xf32> to vector<2x32xf32>
    %209 = vector.broadcast %10 : vector<1x32xf32> to vector<2x32xf32>
    %210 = arith.addf %208, %209 : vector<2x32xf32>
    %211 = arith.mulf %198, %210 : vector<2x32xf32>
    %212 = arith.addf %207, %211 : vector<2x32xf32>
    %213 = math.tanh %212 : vector<2x32xf32>
    %cst_33 = arith.constant 1.000000e+00 : f32
    %214 = vector.broadcast %cst_33 : f32 to vector<2x32xf32>
    %215 = arith.subf %214, %206 : vector<2x32xf32>
    %216 = arith.mulf %215, %213 : vector<2x32xf32>
    %217 = arith.mulf %206, %187 : vector<2x32xf32>
    %218 = arith.addf %216, %217 : vector<2x32xf32>
    %219 = vector.extract_strided_slice %22 {offsets = [12, 0], sizes = [2, 128], strides = [1, 1]} : vector<14x128xf32> to vector<2x128xf32>
    %220 = arith.truncf %218 : vector<2x32xf32> to vector<2x32xbf16>
    %cst_34 = arith.constant dense<0.000000e+00> : vector<2x128xf32>
    %221 = tpu.matmul %220, %3, %cst_34 {dimension_numbers = #tpu.dot_dimension_numbers<[1], [0], [0], [1], [0, 0, 1, 1], [], []>} : vector<2x32xbf16>, vector<32x128xbf16>, vector<2x128xf32> -> vector<2x128xf32>
    %222 = vector.extract_strided_slice %219 {offsets = [0, 0], sizes = [2, 32], strides = [1, 1]} : vector<2x128xf32> to vector<2x32xf32>
    %223 = vector.extract_strided_slice %221 {offsets = [0, 0], sizes = [2, 32], strides = [1, 1]} : vector<2x128xf32> to vector<2x32xf32>
    %224 = arith.addf %222, %223 : vector<2x32xf32>
    %225 = arith.negf %224 : vector<2x32xf32>
    %226 = math.exp %225 : vector<2x32xf32>
    %cst_35 = arith.constant 1.000000e+00 : f32
    %227 = vector.broadcast %cst_35 : f32 to vector<2x32xf32>
    %228 = arith.addf %227, %226 : vector<2x32xf32>
    %229 = arith.divf %227, %228 : vector<2x32xf32>
    %230 = vector.extract_strided_slice %219 {offsets = [0, 32], sizes = [2, 32], strides = [1, 1]} : vector<2x128xf32> to vector<2x32xf32>
    %231 = vector.extract_strided_slice %221 {offsets = [0, 32], sizes = [2, 32], strides = [1, 1]} : vector<2x128xf32> to vector<2x32xf32>
    %232 = arith.addf %230, %231 : vector<2x32xf32>
    %233 = arith.negf %232 : vector<2x32xf32>
    %234 = math.exp %233 : vector<2x32xf32>
    %cst_36 = arith.constant 1.000000e+00 : f32
    %235 = vector.broadcast %cst_36 : f32 to vector<2x32xf32>
    %236 = arith.addf %235, %234 : vector<2x32xf32>
    %237 = arith.divf %235, %236 : vector<2x32xf32>
    %238 = vector.extract_strided_slice %219 {offsets = [0, 64], sizes = [2, 32], strides = [1, 1]} : vector<2x128xf32> to vector<2x32xf32>
    %239 = vector.extract_strided_slice %221 {offsets = [0, 64], sizes = [2, 32], strides = [1, 1]} : vector<2x128xf32> to vector<2x32xf32>
    %240 = vector.broadcast %10 : vector<1x32xf32> to vector<2x32xf32>
    %241 = arith.addf %239, %240 : vector<2x32xf32>
    %242 = arith.mulf %229, %241 : vector<2x32xf32>
    %243 = arith.addf %238, %242 : vector<2x32xf32>
    %244 = math.tanh %243 : vector<2x32xf32>
    %cst_37 = arith.constant 1.000000e+00 : f32
    %245 = vector.broadcast %cst_37 : f32 to vector<2x32xf32>
    %246 = arith.subf %245, %237 : vector<2x32xf32>
    %247 = arith.mulf %246, %244 : vector<2x32xf32>
    %248 = arith.mulf %237, %218 : vector<2x32xf32>
    %249 = arith.addf %247, %248 : vector<2x32xf32>
    %250 = tpu.iota {dimensions = array<i32: 0>} : vector<16x32xi32>
    %cst_38 = arith.constant 0.000000e+00 : f32
    %251 = vector.broadcast %cst_38 : f32 to vector<16x32xf32>
    %252 = vector.extract_strided_slice %31 {offsets = [0, 0], sizes = [2, 128], strides = [1, 1]} : vector<14x128xf32> to vector<2x128xf32>
    %253 = arith.truncf %249 : vector<2x32xf32> to vector<2x32xbf16>
    %cst_39 = arith.constant dense<0.000000e+00> : vector<2x128xf32>
    %254 = tpu.matmul %253, %6, %cst_39 {dimension_numbers = #tpu.dot_dimension_numbers<[1], [0], [0], [1], [0, 0, 1, 1], [], []>} : vector<2x32xbf16>, vector<32x128xbf16>, vector<2x128xf32> -> vector<2x128xf32>
    %255 = vector.extract_strided_slice %252 {offsets = [0, 0], sizes = [2, 32], strides = [1, 1]} : vector<2x128xf32> to vector<2x32xf32>
    %256 = vector.extract_strided_slice %254 {offsets = [0, 0], sizes = [2, 32], strides = [1, 1]} : vector<2x128xf32> to vector<2x32xf32>
    %257 = arith.addf %255, %256 : vector<2x32xf32>
    %258 = arith.negf %257 : vector<2x32xf32>
    %259 = math.exp %258 : vector<2x32xf32>
    %cst_40 = arith.constant 1.000000e+00 : f32
    %260 = vector.broadcast %cst_40 : f32 to vector<2x32xf32>
    %261 = arith.addf %260, %259 : vector<2x32xf32>
    %262 = arith.divf %260, %261 : vector<2x32xf32>
    %263 = vector.extract_strided_slice %252 {offsets = [0, 32], sizes = [2, 32], strides = [1, 1]} : vector<2x128xf32> to vector<2x32xf32>
    %264 = vector.extract_strided_slice %254 {offsets = [0, 32], sizes = [2, 32], strides = [1, 1]} : vector<2x128xf32> to vector<2x32xf32>
    %265 = arith.addf %263, %264 : vector<2x32xf32>
    %266 = arith.negf %265 : vector<2x32xf32>
    %267 = math.exp %266 : vector<2x32xf32>
    %cst_41 = arith.constant 1.000000e+00 : f32
    %268 = vector.broadcast %cst_41 : f32 to vector<2x32xf32>
    %269 = arith.addf %268, %267 : vector<2x32xf32>
    %270 = arith.divf %268, %269 : vector<2x32xf32>
    %271 = vector.extract_strided_slice %252 {offsets = [0, 64], sizes = [2, 32], strides = [1, 1]} : vector<2x128xf32> to vector<2x32xf32>
    %272 = vector.extract_strided_slice %254 {offsets = [0, 64], sizes = [2, 32], strides = [1, 1]} : vector<2x128xf32> to vector<2x32xf32>
    %273 = vector.broadcast %12 : vector<1x32xf32> to vector<2x32xf32>
    %274 = arith.addf %272, %273 : vector<2x32xf32>
    %275 = arith.mulf %262, %274 : vector<2x32xf32>
    %276 = arith.addf %271, %275 : vector<2x32xf32>
    %277 = math.tanh %276 : vector<2x32xf32>
    %cst_42 = arith.constant 1.000000e+00 : f32
    %278 = vector.broadcast %cst_42 : f32 to vector<2x32xf32>
    %279 = arith.subf %278, %270 : vector<2x32xf32>
    %280 = arith.mulf %279, %277 : vector<2x32xf32>
    %281 = arith.mulf %270, %249 : vector<2x32xf32>
    %282 = arith.addf %280, %281 : vector<2x32xf32>
    %c0_i32 = arith.constant 0 : i32
    %283 = vector.broadcast %c0_i32 : i32 to vector<16x32xi32>
    %284 = arith.cmpi eq, %250, %283 : vector<16x32xi32>
    %285 = vector.extract_strided_slice %282 {offsets = [0, 0], sizes = [1, 32], strides = [1, 1]} : vector<2x32xf32> to vector<1x32xf32>
    %286 = vector.shape_cast %285 : vector<1x32xf32> to vector<1x32xf32>
    %287 = vector.broadcast %286 : vector<1x32xf32> to vector<16x32xf32>
    %288 = arith.select %284, %287, %251 : vector<16x32xi1>, vector<16x32xf32>
    %c1_i32 = arith.constant 1 : i32
    %289 = vector.broadcast %c1_i32 : i32 to vector<16x32xi32>
    %290 = arith.cmpi eq, %250, %289 : vector<16x32xi32>
    %291 = vector.extract_strided_slice %282 {offsets = [1, 0], sizes = [1, 32], strides = [1, 1]} : vector<2x32xf32> to vector<1x32xf32>
    %292 = vector.shape_cast %291 : vector<1x32xf32> to vector<1x32xf32>
    %293 = vector.broadcast %292 : vector<1x32xf32> to vector<16x32xf32>
    %294 = arith.select %290, %293, %288 : vector<16x32xi1>, vector<16x32xf32>
    %295 = vector.extract_strided_slice %31 {offsets = [2, 0], sizes = [2, 128], strides = [1, 1]} : vector<14x128xf32> to vector<2x128xf32>
    %296 = arith.truncf %282 : vector<2x32xf32> to vector<2x32xbf16>
    %cst_43 = arith.constant dense<0.000000e+00> : vector<2x128xf32>
    %297 = tpu.matmul %296, %6, %cst_43 {dimension_numbers = #tpu.dot_dimension_numbers<[1], [0], [0], [1], [0, 0, 1, 1], [], []>} : vector<2x32xbf16>, vector<32x128xbf16>, vector<2x128xf32> -> vector<2x128xf32>
    %298 = vector.extract_strided_slice %295 {offsets = [0, 0], sizes = [2, 32], strides = [1, 1]} : vector<2x128xf32> to vector<2x32xf32>
    %299 = vector.extract_strided_slice %297 {offsets = [0, 0], sizes = [2, 32], strides = [1, 1]} : vector<2x128xf32> to vector<2x32xf32>
    %300 = arith.addf %298, %299 : vector<2x32xf32>
    %301 = arith.negf %300 : vector<2x32xf32>
    %302 = math.exp %301 : vector<2x32xf32>
    %cst_44 = arith.constant 1.000000e+00 : f32
    %303 = vector.broadcast %cst_44 : f32 to vector<2x32xf32>
    %304 = arith.addf %303, %302 : vector<2x32xf32>
    %305 = arith.divf %303, %304 : vector<2x32xf32>
    %306 = vector.extract_strided_slice %295 {offsets = [0, 32], sizes = [2, 32], strides = [1, 1]} : vector<2x128xf32> to vector<2x32xf32>
    %307 = vector.extract_strided_slice %297 {offsets = [0, 32], sizes = [2, 32], strides = [1, 1]} : vector<2x128xf32> to vector<2x32xf32>
    %308 = arith.addf %306, %307 : vector<2x32xf32>
    %309 = arith.negf %308 : vector<2x32xf32>
    %310 = math.exp %309 : vector<2x32xf32>
    %cst_45 = arith.constant 1.000000e+00 : f32
    %311 = vector.broadcast %cst_45 : f32 to vector<2x32xf32>
    %312 = arith.addf %311, %310 : vector<2x32xf32>
    %313 = arith.divf %311, %312 : vector<2x32xf32>
    %314 = vector.extract_strided_slice %295 {offsets = [0, 64], sizes = [2, 32], strides = [1, 1]} : vector<2x128xf32> to vector<2x32xf32>
    %315 = vector.extract_strided_slice %297 {offsets = [0, 64], sizes = [2, 32], strides = [1, 1]} : vector<2x128xf32> to vector<2x32xf32>
    %316 = vector.broadcast %12 : vector<1x32xf32> to vector<2x32xf32>
    %317 = arith.addf %315, %316 : vector<2x32xf32>
    %318 = arith.mulf %305, %317 : vector<2x32xf32>
    %319 = arith.addf %314, %318 : vector<2x32xf32>
    %320 = math.tanh %319 : vector<2x32xf32>
    %cst_46 = arith.constant 1.000000e+00 : f32
    %321 = vector.broadcast %cst_46 : f32 to vector<2x32xf32>
    %322 = arith.subf %321, %313 : vector<2x32xf32>
    %323 = arith.mulf %322, %320 : vector<2x32xf32>
    %324 = arith.mulf %313, %282 : vector<2x32xf32>
    %325 = arith.addf %323, %324 : vector<2x32xf32>
    %c2_i32 = arith.constant 2 : i32
    %326 = vector.broadcast %c2_i32 : i32 to vector<16x32xi32>
    %327 = arith.cmpi eq, %250, %326 : vector<16x32xi32>
    %328 = vector.extract_strided_slice %325 {offsets = [0, 0], sizes = [1, 32], strides = [1, 1]} : vector<2x32xf32> to vector<1x32xf32>
    %329 = vector.shape_cast %328 : vector<1x32xf32> to vector<1x32xf32>
    %330 = vector.broadcast %329 : vector<1x32xf32> to vector<16x32xf32>
    %331 = arith.select %327, %330, %294 : vector<16x32xi1>, vector<16x32xf32>
    %c3_i32 = arith.constant 3 : i32
    %332 = vector.broadcast %c3_i32 : i32 to vector<16x32xi32>
    %333 = arith.cmpi eq, %250, %332 : vector<16x32xi32>
    %334 = vector.extract_strided_slice %325 {offsets = [1, 0], sizes = [1, 32], strides = [1, 1]} : vector<2x32xf32> to vector<1x32xf32>
    %335 = vector.shape_cast %334 : vector<1x32xf32> to vector<1x32xf32>
    %336 = vector.broadcast %335 : vector<1x32xf32> to vector<16x32xf32>
    %337 = arith.select %333, %336, %331 : vector<16x32xi1>, vector<16x32xf32>
    %338 = vector.extract_strided_slice %31 {offsets = [4, 0], sizes = [2, 128], strides = [1, 1]} : vector<14x128xf32> to vector<2x128xf32>
    %339 = arith.truncf %325 : vector<2x32xf32> to vector<2x32xbf16>
    %cst_47 = arith.constant dense<0.000000e+00> : vector<2x128xf32>
    %340 = tpu.matmul %339, %6, %cst_47 {dimension_numbers = #tpu.dot_dimension_numbers<[1], [0], [0], [1], [0, 0, 1, 1], [], []>} : vector<2x32xbf16>, vector<32x128xbf16>, vector<2x128xf32> -> vector<2x128xf32>
    %341 = vector.extract_strided_slice %338 {offsets = [0, 0], sizes = [2, 32], strides = [1, 1]} : vector<2x128xf32> to vector<2x32xf32>
    %342 = vector.extract_strided_slice %340 {offsets = [0, 0], sizes = [2, 32], strides = [1, 1]} : vector<2x128xf32> to vector<2x32xf32>
    %343 = arith.addf %341, %342 : vector<2x32xf32>
    %344 = arith.negf %343 : vector<2x32xf32>
    %345 = math.exp %344 : vector<2x32xf32>
    %cst_48 = arith.constant 1.000000e+00 : f32
    %346 = vector.broadcast %cst_48 : f32 to vector<2x32xf32>
    %347 = arith.addf %346, %345 : vector<2x32xf32>
    %348 = arith.divf %346, %347 : vector<2x32xf32>
    %349 = vector.extract_strided_slice %338 {offsets = [0, 32], sizes = [2, 32], strides = [1, 1]} : vector<2x128xf32> to vector<2x32xf32>
    %350 = vector.extract_strided_slice %340 {offsets = [0, 32], sizes = [2, 32], strides = [1, 1]} : vector<2x128xf32> to vector<2x32xf32>
    %351 = arith.addf %349, %350 : vector<2x32xf32>
    %352 = arith.negf %351 : vector<2x32xf32>
    %353 = math.exp %352 : vector<2x32xf32>
    %cst_49 = arith.constant 1.000000e+00 : f32
    %354 = vector.broadcast %cst_49 : f32 to vector<2x32xf32>
    %355 = arith.addf %354, %353 : vector<2x32xf32>
    %356 = arith.divf %354, %355 : vector<2x32xf32>
    %357 = vector.extract_strided_slice %338 {offsets = [0, 64], sizes = [2, 32], strides = [1, 1]} : vector<2x128xf32> to vector<2x32xf32>
    %358 = vector.extract_strided_slice %340 {offsets = [0, 64], sizes = [2, 32], strides = [1, 1]} : vector<2x128xf32> to vector<2x32xf32>
    %359 = vector.broadcast %12 : vector<1x32xf32> to vector<2x32xf32>
    %360 = arith.addf %358, %359 : vector<2x32xf32>
    %361 = arith.mulf %348, %360 : vector<2x32xf32>
    %362 = arith.addf %357, %361 : vector<2x32xf32>
    %363 = math.tanh %362 : vector<2x32xf32>
    %cst_50 = arith.constant 1.000000e+00 : f32
    %364 = vector.broadcast %cst_50 : f32 to vector<2x32xf32>
    %365 = arith.subf %364, %356 : vector<2x32xf32>
    %366 = arith.mulf %365, %363 : vector<2x32xf32>
    %367 = arith.mulf %356, %325 : vector<2x32xf32>
    %368 = arith.addf %366, %367 : vector<2x32xf32>
    %c4_i32 = arith.constant 4 : i32
    %369 = vector.broadcast %c4_i32 : i32 to vector<16x32xi32>
    %370 = arith.cmpi eq, %250, %369 : vector<16x32xi32>
    %371 = vector.extract_strided_slice %368 {offsets = [0, 0], sizes = [1, 32], strides = [1, 1]} : vector<2x32xf32> to vector<1x32xf32>
    %372 = vector.shape_cast %371 : vector<1x32xf32> to vector<1x32xf32>
    %373 = vector.broadcast %372 : vector<1x32xf32> to vector<16x32xf32>
    %374 = arith.select %370, %373, %337 : vector<16x32xi1>, vector<16x32xf32>
    %c5_i32 = arith.constant 5 : i32
    %375 = vector.broadcast %c5_i32 : i32 to vector<16x32xi32>
    %376 = arith.cmpi eq, %250, %375 : vector<16x32xi32>
    %377 = vector.extract_strided_slice %368 {offsets = [1, 0], sizes = [1, 32], strides = [1, 1]} : vector<2x32xf32> to vector<1x32xf32>
    %378 = vector.shape_cast %377 : vector<1x32xf32> to vector<1x32xf32>
    %379 = vector.broadcast %378 : vector<1x32xf32> to vector<16x32xf32>
    %380 = arith.select %376, %379, %374 : vector<16x32xi1>, vector<16x32xf32>
    %381 = vector.extract_strided_slice %31 {offsets = [6, 0], sizes = [2, 128], strides = [1, 1]} : vector<14x128xf32> to vector<2x128xf32>
    %382 = arith.truncf %368 : vector<2x32xf32> to vector<2x32xbf16>
    %cst_51 = arith.constant dense<0.000000e+00> : vector<2x128xf32>
    %383 = tpu.matmul %382, %6, %cst_51 {dimension_numbers = #tpu.dot_dimension_numbers<[1], [0], [0], [1], [0, 0, 1, 1], [], []>} : vector<2x32xbf16>, vector<32x128xbf16>, vector<2x128xf32> -> vector<2x128xf32>
    %384 = vector.extract_strided_slice %381 {offsets = [0, 0], sizes = [2, 32], strides = [1, 1]} : vector<2x128xf32> to vector<2x32xf32>
    %385 = vector.extract_strided_slice %383 {offsets = [0, 0], sizes = [2, 32], strides = [1, 1]} : vector<2x128xf32> to vector<2x32xf32>
    %386 = arith.addf %384, %385 : vector<2x32xf32>
    %387 = arith.negf %386 : vector<2x32xf32>
    %388 = math.exp %387 : vector<2x32xf32>
    %cst_52 = arith.constant 1.000000e+00 : f32
    %389 = vector.broadcast %cst_52 : f32 to vector<2x32xf32>
    %390 = arith.addf %389, %388 : vector<2x32xf32>
    %391 = arith.divf %389, %390 : vector<2x32xf32>
    %392 = vector.extract_strided_slice %381 {offsets = [0, 32], sizes = [2, 32], strides = [1, 1]} : vector<2x128xf32> to vector<2x32xf32>
    %393 = vector.extract_strided_slice %383 {offsets = [0, 32], sizes = [2, 32], strides = [1, 1]} : vector<2x128xf32> to vector<2x32xf32>
    %394 = arith.addf %392, %393 : vector<2x32xf32>
    %395 = arith.negf %394 : vector<2x32xf32>
    %396 = math.exp %395 : vector<2x32xf32>
    %cst_53 = arith.constant 1.000000e+00 : f32
    %397 = vector.broadcast %cst_53 : f32 to vector<2x32xf32>
    %398 = arith.addf %397, %396 : vector<2x32xf32>
    %399 = arith.divf %397, %398 : vector<2x32xf32>
    %400 = vector.extract_strided_slice %381 {offsets = [0, 64], sizes = [2, 32], strides = [1, 1]} : vector<2x128xf32> to vector<2x32xf32>
    %401 = vector.extract_strided_slice %383 {offsets = [0, 64], sizes = [2, 32], strides = [1, 1]} : vector<2x128xf32> to vector<2x32xf32>
    %402 = vector.broadcast %12 : vector<1x32xf32> to vector<2x32xf32>
    %403 = arith.addf %401, %402 : vector<2x32xf32>
    %404 = arith.mulf %391, %403 : vector<2x32xf32>
    %405 = arith.addf %400, %404 : vector<2x32xf32>
    %406 = math.tanh %405 : vector<2x32xf32>
    %cst_54 = arith.constant 1.000000e+00 : f32
    %407 = vector.broadcast %cst_54 : f32 to vector<2x32xf32>
    %408 = arith.subf %407, %399 : vector<2x32xf32>
    %409 = arith.mulf %408, %406 : vector<2x32xf32>
    %410 = arith.mulf %399, %368 : vector<2x32xf32>
    %411 = arith.addf %409, %410 : vector<2x32xf32>
    %c6_i32 = arith.constant 6 : i32
    %412 = vector.broadcast %c6_i32 : i32 to vector<16x32xi32>
    %413 = arith.cmpi eq, %250, %412 : vector<16x32xi32>
    %414 = vector.extract_strided_slice %411 {offsets = [0, 0], sizes = [1, 32], strides = [1, 1]} : vector<2x32xf32> to vector<1x32xf32>
    %415 = vector.shape_cast %414 : vector<1x32xf32> to vector<1x32xf32>
    %416 = vector.broadcast %415 : vector<1x32xf32> to vector<16x32xf32>
    %417 = arith.select %413, %416, %380 : vector<16x32xi1>, vector<16x32xf32>
    %c7_i32 = arith.constant 7 : i32
    %418 = vector.broadcast %c7_i32 : i32 to vector<16x32xi32>
    %419 = arith.cmpi eq, %250, %418 : vector<16x32xi32>
    %420 = vector.extract_strided_slice %411 {offsets = [1, 0], sizes = [1, 32], strides = [1, 1]} : vector<2x32xf32> to vector<1x32xf32>
    %421 = vector.shape_cast %420 : vector<1x32xf32> to vector<1x32xf32>
    %422 = vector.broadcast %421 : vector<1x32xf32> to vector<16x32xf32>
    %423 = arith.select %419, %422, %417 : vector<16x32xi1>, vector<16x32xf32>
    %424 = vector.extract_strided_slice %31 {offsets = [8, 0], sizes = [2, 128], strides = [1, 1]} : vector<14x128xf32> to vector<2x128xf32>
    %425 = arith.truncf %411 : vector<2x32xf32> to vector<2x32xbf16>
    %cst_55 = arith.constant dense<0.000000e+00> : vector<2x128xf32>
    %426 = tpu.matmul %425, %6, %cst_55 {dimension_numbers = #tpu.dot_dimension_numbers<[1], [0], [0], [1], [0, 0, 1, 1], [], []>} : vector<2x32xbf16>, vector<32x128xbf16>, vector<2x128xf32> -> vector<2x128xf32>
    %427 = vector.extract_strided_slice %424 {offsets = [0, 0], sizes = [2, 32], strides = [1, 1]} : vector<2x128xf32> to vector<2x32xf32>
    %428 = vector.extract_strided_slice %426 {offsets = [0, 0], sizes = [2, 32], strides = [1, 1]} : vector<2x128xf32> to vector<2x32xf32>
    %429 = arith.addf %427, %428 : vector<2x32xf32>
    %430 = arith.negf %429 : vector<2x32xf32>
    %431 = math.exp %430 : vector<2x32xf32>
    %cst_56 = arith.constant 1.000000e+00 : f32
    %432 = vector.broadcast %cst_56 : f32 to vector<2x32xf32>
    %433 = arith.addf %432, %431 : vector<2x32xf32>
    %434 = arith.divf %432, %433 : vector<2x32xf32>
    %435 = vector.extract_strided_slice %424 {offsets = [0, 32], sizes = [2, 32], strides = [1, 1]} : vector<2x128xf32> to vector<2x32xf32>
    %436 = vector.extract_strided_slice %426 {offsets = [0, 32], sizes = [2, 32], strides = [1, 1]} : vector<2x128xf32> to vector<2x32xf32>
    %437 = arith.addf %435, %436 : vector<2x32xf32>
    %438 = arith.negf %437 : vector<2x32xf32>
    %439 = math.exp %438 : vector<2x32xf32>
    %cst_57 = arith.constant 1.000000e+00 : f32
    %440 = vector.broadcast %cst_57 : f32 to vector<2x32xf32>
    %441 = arith.addf %440, %439 : vector<2x32xf32>
    %442 = arith.divf %440, %441 : vector<2x32xf32>
    %443 = vector.extract_strided_slice %424 {offsets = [0, 64], sizes = [2, 32], strides = [1, 1]} : vector<2x128xf32> to vector<2x32xf32>
    %444 = vector.extract_strided_slice %426 {offsets = [0, 64], sizes = [2, 32], strides = [1, 1]} : vector<2x128xf32> to vector<2x32xf32>
    %445 = vector.broadcast %12 : vector<1x32xf32> to vector<2x32xf32>
    %446 = arith.addf %444, %445 : vector<2x32xf32>
    %447 = arith.mulf %434, %446 : vector<2x32xf32>
    %448 = arith.addf %443, %447 : vector<2x32xf32>
    %449 = math.tanh %448 : vector<2x32xf32>
    %cst_58 = arith.constant 1.000000e+00 : f32
    %450 = vector.broadcast %cst_58 : f32 to vector<2x32xf32>
    %451 = arith.subf %450, %442 : vector<2x32xf32>
    %452 = arith.mulf %451, %449 : vector<2x32xf32>
    %453 = arith.mulf %442, %411 : vector<2x32xf32>
    %454 = arith.addf %452, %453 : vector<2x32xf32>
    %c8_i32 = arith.constant 8 : i32
    %455 = vector.broadcast %c8_i32 : i32 to vector<16x32xi32>
    %456 = arith.cmpi eq, %250, %455 : vector<16x32xi32>
    %457 = vector.extract_strided_slice %454 {offsets = [0, 0], sizes = [1, 32], strides = [1, 1]} : vector<2x32xf32> to vector<1x32xf32>
    %458 = vector.shape_cast %457 : vector<1x32xf32> to vector<1x32xf32>
    %459 = vector.broadcast %458 : vector<1x32xf32> to vector<16x32xf32>
    %460 = arith.select %456, %459, %423 : vector<16x32xi1>, vector<16x32xf32>
    %c9_i32 = arith.constant 9 : i32
    %461 = vector.broadcast %c9_i32 : i32 to vector<16x32xi32>
    %462 = arith.cmpi eq, %250, %461 : vector<16x32xi32>
    %463 = vector.extract_strided_slice %454 {offsets = [1, 0], sizes = [1, 32], strides = [1, 1]} : vector<2x32xf32> to vector<1x32xf32>
    %464 = vector.shape_cast %463 : vector<1x32xf32> to vector<1x32xf32>
    %465 = vector.broadcast %464 : vector<1x32xf32> to vector<16x32xf32>
    %466 = arith.select %462, %465, %460 : vector<16x32xi1>, vector<16x32xf32>
    %467 = vector.extract_strided_slice %31 {offsets = [10, 0], sizes = [2, 128], strides = [1, 1]} : vector<14x128xf32> to vector<2x128xf32>
    %468 = arith.truncf %454 : vector<2x32xf32> to vector<2x32xbf16>
    %cst_59 = arith.constant dense<0.000000e+00> : vector<2x128xf32>
    %469 = tpu.matmul %468, %6, %cst_59 {dimension_numbers = #tpu.dot_dimension_numbers<[1], [0], [0], [1], [0, 0, 1, 1], [], []>} : vector<2x32xbf16>, vector<32x128xbf16>, vector<2x128xf32> -> vector<2x128xf32>
    %470 = vector.extract_strided_slice %467 {offsets = [0, 0], sizes = [2, 32], strides = [1, 1]} : vector<2x128xf32> to vector<2x32xf32>
    %471 = vector.extract_strided_slice %469 {offsets = [0, 0], sizes = [2, 32], strides = [1, 1]} : vector<2x128xf32> to vector<2x32xf32>
    %472 = arith.addf %470, %471 : vector<2x32xf32>
    %473 = arith.negf %472 : vector<2x32xf32>
    %474 = math.exp %473 : vector<2x32xf32>
    %cst_60 = arith.constant 1.000000e+00 : f32
    %475 = vector.broadcast %cst_60 : f32 to vector<2x32xf32>
    %476 = arith.addf %475, %474 : vector<2x32xf32>
    %477 = arith.divf %475, %476 : vector<2x32xf32>
    %478 = vector.extract_strided_slice %467 {offsets = [0, 32], sizes = [2, 32], strides = [1, 1]} : vector<2x128xf32> to vector<2x32xf32>
    %479 = vector.extract_strided_slice %469 {offsets = [0, 32], sizes = [2, 32], strides = [1, 1]} : vector<2x128xf32> to vector<2x32xf32>
    %480 = arith.addf %478, %479 : vector<2x32xf32>
    %481 = arith.negf %480 : vector<2x32xf32>
    %482 = math.exp %481 : vector<2x32xf32>
    %cst_61 = arith.constant 1.000000e+00 : f32
    %483 = vector.broadcast %cst_61 : f32 to vector<2x32xf32>
    %484 = arith.addf %483, %482 : vector<2x32xf32>
    %485 = arith.divf %483, %484 : vector<2x32xf32>
    %486 = vector.extract_strided_slice %467 {offsets = [0, 64], sizes = [2, 32], strides = [1, 1]} : vector<2x128xf32> to vector<2x32xf32>
    %487 = vector.extract_strided_slice %469 {offsets = [0, 64], sizes = [2, 32], strides = [1, 1]} : vector<2x128xf32> to vector<2x32xf32>
    %488 = vector.broadcast %12 : vector<1x32xf32> to vector<2x32xf32>
    %489 = arith.addf %487, %488 : vector<2x32xf32>
    %490 = arith.mulf %477, %489 : vector<2x32xf32>
    %491 = arith.addf %486, %490 : vector<2x32xf32>
    %492 = math.tanh %491 : vector<2x32xf32>
    %cst_62 = arith.constant 1.000000e+00 : f32
    %493 = vector.broadcast %cst_62 : f32 to vector<2x32xf32>
    %494 = arith.subf %493, %485 : vector<2x32xf32>
    %495 = arith.mulf %494, %492 : vector<2x32xf32>
    %496 = arith.mulf %485, %454 : vector<2x32xf32>
    %497 = arith.addf %495, %496 : vector<2x32xf32>
    %c10_i32 = arith.constant 10 : i32
    %498 = vector.broadcast %c10_i32 : i32 to vector<16x32xi32>
    %499 = arith.cmpi eq, %250, %498 : vector<16x32xi32>
    %500 = vector.extract_strided_slice %497 {offsets = [0, 0], sizes = [1, 32], strides = [1, 1]} : vector<2x32xf32> to vector<1x32xf32>
    %501 = vector.shape_cast %500 : vector<1x32xf32> to vector<1x32xf32>
    %502 = vector.broadcast %501 : vector<1x32xf32> to vector<16x32xf32>
    %503 = arith.select %499, %502, %466 : vector<16x32xi1>, vector<16x32xf32>
    %c11_i32 = arith.constant 11 : i32
    %504 = vector.broadcast %c11_i32 : i32 to vector<16x32xi32>
    %505 = arith.cmpi eq, %250, %504 : vector<16x32xi32>
    %506 = vector.extract_strided_slice %497 {offsets = [1, 0], sizes = [1, 32], strides = [1, 1]} : vector<2x32xf32> to vector<1x32xf32>
    %507 = vector.shape_cast %506 : vector<1x32xf32> to vector<1x32xf32>
    %508 = vector.broadcast %507 : vector<1x32xf32> to vector<16x32xf32>
    %509 = arith.select %505, %508, %503 : vector<16x32xi1>, vector<16x32xf32>
    %510 = vector.extract_strided_slice %31 {offsets = [12, 0], sizes = [2, 128], strides = [1, 1]} : vector<14x128xf32> to vector<2x128xf32>
    %511 = arith.truncf %497 : vector<2x32xf32> to vector<2x32xbf16>
    %cst_63 = arith.constant dense<0.000000e+00> : vector<2x128xf32>
    %512 = tpu.matmul %511, %6, %cst_63 {dimension_numbers = #tpu.dot_dimension_numbers<[1], [0], [0], [1], [0, 0, 1, 1], [], []>} : vector<2x32xbf16>, vector<32x128xbf16>, vector<2x128xf32> -> vector<2x128xf32>
    %513 = vector.extract_strided_slice %510 {offsets = [0, 0], sizes = [2, 32], strides = [1, 1]} : vector<2x128xf32> to vector<2x32xf32>
    %514 = vector.extract_strided_slice %512 {offsets = [0, 0], sizes = [2, 32], strides = [1, 1]} : vector<2x128xf32> to vector<2x32xf32>
    %515 = arith.addf %513, %514 : vector<2x32xf32>
    %516 = arith.negf %515 : vector<2x32xf32>
    %517 = math.exp %516 : vector<2x32xf32>
    %cst_64 = arith.constant 1.000000e+00 : f32
    %518 = vector.broadcast %cst_64 : f32 to vector<2x32xf32>
    %519 = arith.addf %518, %517 : vector<2x32xf32>
    %520 = arith.divf %518, %519 : vector<2x32xf32>
    %521 = vector.extract_strided_slice %510 {offsets = [0, 32], sizes = [2, 32], strides = [1, 1]} : vector<2x128xf32> to vector<2x32xf32>
    %522 = vector.extract_strided_slice %512 {offsets = [0, 32], sizes = [2, 32], strides = [1, 1]} : vector<2x128xf32> to vector<2x32xf32>
    %523 = arith.addf %521, %522 : vector<2x32xf32>
    %524 = arith.negf %523 : vector<2x32xf32>
    %525 = math.exp %524 : vector<2x32xf32>
    %cst_65 = arith.constant 1.000000e+00 : f32
    %526 = vector.broadcast %cst_65 : f32 to vector<2x32xf32>
    %527 = arith.addf %526, %525 : vector<2x32xf32>
    %528 = arith.divf %526, %527 : vector<2x32xf32>
    %529 = vector.extract_strided_slice %510 {offsets = [0, 64], sizes = [2, 32], strides = [1, 1]} : vector<2x128xf32> to vector<2x32xf32>
    %530 = vector.extract_strided_slice %512 {offsets = [0, 64], sizes = [2, 32], strides = [1, 1]} : vector<2x128xf32> to vector<2x32xf32>
    %531 = vector.broadcast %12 : vector<1x32xf32> to vector<2x32xf32>
    %532 = arith.addf %530, %531 : vector<2x32xf32>
    %533 = arith.mulf %520, %532 : vector<2x32xf32>
    %534 = arith.addf %529, %533 : vector<2x32xf32>
    %535 = math.tanh %534 : vector<2x32xf32>
    %cst_66 = arith.constant 1.000000e+00 : f32
    %536 = vector.broadcast %cst_66 : f32 to vector<2x32xf32>
    %537 = arith.subf %536, %528 : vector<2x32xf32>
    %538 = arith.mulf %537, %535 : vector<2x32xf32>
    %539 = arith.mulf %528, %497 : vector<2x32xf32>
    %540 = arith.addf %538, %539 : vector<2x32xf32>
    %c12_i32 = arith.constant 12 : i32
    %541 = vector.broadcast %c12_i32 : i32 to vector<16x32xi32>
    %542 = arith.cmpi eq, %250, %541 : vector<16x32xi32>
    %543 = vector.extract_strided_slice %540 {offsets = [0, 0], sizes = [1, 32], strides = [1, 1]} : vector<2x32xf32> to vector<1x32xf32>
    %544 = vector.shape_cast %543 : vector<1x32xf32> to vector<1x32xf32>
    %545 = vector.broadcast %544 : vector<1x32xf32> to vector<16x32xf32>
    %546 = arith.select %542, %545, %509 : vector<16x32xi1>, vector<16x32xf32>
    %c13_i32 = arith.constant 13 : i32
    %547 = vector.broadcast %c13_i32 : i32 to vector<16x32xi32>
    %548 = arith.cmpi eq, %250, %547 : vector<16x32xi32>
    %549 = vector.extract_strided_slice %540 {offsets = [1, 0], sizes = [1, 32], strides = [1, 1]} : vector<2x32xf32> to vector<1x32xf32>
    %550 = vector.shape_cast %549 : vector<1x32xf32> to vector<1x32xf32>
    %551 = vector.broadcast %550 : vector<1x32xf32> to vector<16x32xf32>
    %552 = arith.select %548, %551, %546 : vector<16x32xi1>, vector<16x32xf32>
    %cst_67 = arith.constant dense<0.000000e+00> : vector<16x128xf32>
    %553 = tpu.matmul %552, %7, %cst_67 {dimension_numbers = #tpu.dot_dimension_numbers<[1], [0], [0], [1], [0, 0, 1, 1], [], []>} : vector<16x32xf32>, vector<32x128xf32>, vector<16x128xf32> -> vector<16x128xf32>
    %554 = vector.broadcast %13 : vector<1x128xf32> to vector<16x128xf32>
    %555 = arith.addf %553, %554 : vector<16x128xf32>
    %c0_68 = arith.constant 0 : index
    %c0_69 = arith.constant 0 : index
    %556 = vector.load %arg2[%c0_68, %c0_69] : memref<16x128xf32, #tpu.memory_space<vmem>>, vector<16x128xf32>
    tpu.vector_store %arg2[%c0_68, %c0_69], %555 {strides = array<i32>} : memref<16x128xf32, #tpu.memory_space<vmem>>, vector<16x128xf32>,
    return
  }
}

</mosaic_0001>

<llo_original>
// kernel: seq2seq_forward.1
$region0: #{seq2seq_forward.1}
  #allocation0 [shape = 'u32[]', space=smem, size = 0x4, offset = 0x4, fixed_abs, tag = 'smem constant byte address 0x4 - core index']
  #allocation1 [shape = 'u32[144,128]{1,0:T(1,128)}', space=vmem, size = 0x12000, scoped, tag = 'internal scratch']
  %s0 = inlined_call_operand.vmem [shape: s32[32,1], index: 0, kind: input, shape index: {}]
  %s1 = inlined_call_operand.vmem [shape: f32[208,128], index: 1, kind: input, shape index: {}]
  %s2 = inlined_call_operand.vmem [shape: f32[16,128], index: 2, kind: output, shape index: {}]
  %s3 = sld [smem:[#allocation0]]
  $region18: #{seq2seq_forward.1} parent=0
    _
  %s5 = ssub.s32 1, %s3
  %s6 = scalar_select 0, %s5, %s3
  // Predicated region
  $region2: #{seq2seq_forward.1} parent=0 // pred_check
    _
  $region3: #{seq2seq_forward.1} parent=0 // pred_check_branch
    %8 = sbr.rel (0) target = $region5
  $region4: #{seq2seq_forward.1} parent=0 // pred_region
    _
  $region5: #{seq2seq_forward.1} parent=0 // pred_fallthru
    _
  // Predicated region
  $region6: #{seq2seq_forward.1} parent=0 // pred_check
    _
  $region7: #{seq2seq_forward.1} parent=0 // pred_check_branch
    %10 = sbr.rel (0) target = $region9
  $region8: #{seq2seq_forward.1} parent=0 // pred_region
    _
  $region9: #{seq2seq_forward.1} parent=0 // pred_fallthru
    _
  %v12 = vld [vmem:[%s0] sm:$0xff]
  %v13 = vld [vmem:[%s0 + $0x8] sm:$0xff]
  %v14 = vld [vmem:[%s0 + $0x10] sm:$0xff]
  %v15 = vld [vmem:[%s0 + $0x18] sm:$0xff]
  %v16 = vld [vmem:[%s1] sm:$0xff]
  %v17 = vld [vmem:[%s1 + $0x8] sm:$0xff]
  %v18 = vld [vmem:[%s1 + $0x10] sm:$0xff]
  %v19 = vld [vmem:[%s1 + $0x18] sm:$0xff]
  %v20 = vld [vmem:[%s1 + $0x20] sm:$0xff]
  %v21 = vld [vmem:[%s1 + $0x28] sm:$0xff]
  %v22 = vld [vmem:[%s1 + $0x30] sm:$0xff]
  %v23 = vld [vmem:[%s1 + $0x38] sm:$0xff]
  %v24 = vld [vmem:[%s1 + $0x40] sm:$0xff]
  %v25 = vld [vmem:[%s1 + $0x48] sm:$0xff]
  %v26 = vld [vmem:[%s1 + $0x50] sm:$0xff]
  %v27 = vpack.c.bf16 %v24, %v23
  %v28 = vpack.c.bf16 %v26, %v25
  %v29 = vld [vmem:[%s1 + $0x58] sm:$0xff]
  %v30 = vld [vmem:[%s1 + $0x60] sm:$0xff]
  %v31 = vld [vmem:[%s1 + $0x68] sm:$0xff]
  %v32 = vld [vmem:[%s1 + $0x70] sm:$0xff]
  %v33 = vld [vmem:[%s1 + $0x78] sm:$0xff]
  %v34 = vld [vmem:[%s1 + $0x80] sm:$0xff]
  %v35 = vld [vmem:[%s1 + $0x88] sm:$0xff]
  %v36 = vld [vmem:[%s1 + $0x90] sm:$0xff]
  %v37 = vld [vmem:[%s1 + $0x98] sm:$0xff]
  %v38 = vld [vmem:[%s1 + $0xa0] sm:$0xff]
  %v39 = vpack.c.bf16 %v36, %v35
  %v40 = vpack.c.bf16 %v38, %v37
  %v41 = vld [vmem:[%s1 + $0xa8] sm:$0xff]
  %v42 = vld [vmem:[%s1 + $0xb0] sm:$0xff]
  %v43 = vld [vmem:[%s1 + $0xb8] sm:$0xff]
  %v44 = vld [vmem:[%s1 + $0xc0] sm:$0xff]
  %v45 = vld [vmem:[%s1 + $0xc8] sm:$0xff]
  %v46 = vlaneseq
  %v47 = vand.u32 %v46, 127
  %48 = vset.pattern.permute.xlu0 0
  %49 = vperm.xlu0 %48, %v12
  %v50 = vpop.permute.xlu0 %49
  %51 = vset.pattern.permute.xlu0 0
  %52 = vperm.xlu0 %51, %v13
  %v53 = vpop.permute.xlu0 %52
  %vm54 = vcmp.eq.s32.totalorder %v50, %v47
  %vm55 = vcmp.eq.s32.totalorder %v53, %v47
  %v56 = vsel %vm54, 1, 0
  %v57 = vsel %vm55, 1, 0
  %v58 = vcvt.s32.f32 %v56
  %v59 = vcvt.s32.f32 %v57
  %v60 = vlaneseq
  %v61 = vshrl.u32 %v60, 7
  %v62 = vsub.s32 0, %v61
  %v63 = vrot.slane %v45, %v62
  %vm64 = vcmask 457728
  %v66 = vsel %vm64, %v58, 0
  %v69 = vsel %vm64, %v59, 0
  %71 = vmatprep.subr.mxu0 0.0
  %72 = vmatpush1.msra.mxu0 %v16
  %73 = vmatprep.subr.mxu0 0.0
  %74 = vmatpush1.msra.mxu0 %v17
  %75 = vmatprep.subr.mxu0 0.0
  %76 = vmatpush1.msra.mxu0 %v18
  %77 = vmatprep.subr.mxu0 0.0
  %78 = vmatpush1.msra.mxu0 %v19
  %79 = vmatprep.subr.mxu0 0.0
  %80 = vmatpush1.msra.mxu0 %v20
  %81 = vmatprep.subr.mxu0 0.0
  %82 = vmatpush1.msra.mxu0 %v21
  %83 = vmatprep.subr.mxu0 0.0
  %84 = vmatpush1.msra.mxu0 %v22
  %85 = vmatprep.subr.mxu0 0.0
  %86 = vmatpush1.msra.mxu0 0.0
  %87 = vmatprep.subr.mxu0 0.0
  %88 = vmatpush1.msra.mxu0 0.0
  %89 = vmatprep.subr.mxu0 0.0
  %90 = vmatpush1.msra.mxu0 0.0
  %91 = vmatprep.subr.mxu0 0.0
  %92 = vmatpush1.msra.mxu0 0.0
  %93 = vmatprep.subr.mxu0 0.0
  %94 = vmatpush1.msra.mxu0 0.0
  %95 = vmatprep.subr.mxu0 0.0
  %96 = vmatpush1.msra.mxu0 0.0
  %97 = vmatprep.subr.mxu0 0.0
  %98 = vmatpush1.msra.mxu0 0.0
  %99 = vmatprep.subr.mxu0 0.0
  %100 = vmatpush1.msra.mxu0 0.0
  %101 = vmatprep.subr.mxu0 0.0
  %102 = vmatpush1.msra.mxu0 0.0
  %103 = vmatprep.subr.mxu0 0.0
  %104 = vmatpush1.msra.mxu0 0.0
  %105 = vmatprep.subr.mxu0 0.0
  %106 = vmatpush1.msra.mxu0 0.0
  %107 = vmatprep.subr.mxu0 0.0
  %108 = vmatpush1.msra.mxu0 0.0
  %109 = vmatprep.subr.mxu0 0.0
  %110 = vmatpush1.msra.mxu0 0.0
  %111 = vmatprep.subr.mxu0 0.0
  %112 = vmatpush1.msra.mxu0 0.0
  %113 = vmatprep.subr.mxu0 0.0
  %114 = vmatpush1.msra.mxu0 0.0
  %115 = vmatprep.subr.mxu0 0.0
  %116 = vmatpush1.msra.mxu0 0.0
  %117 = vmatprep.subr.mxu0 0.0
  %118 = vmatpush1.msra.mxu0 0.0
  %119 = vmatprep.subr.mxu0 0.0
  %120 = vmatpush1.msra.mxu0 0.0
  %121 = vmatprep.subr.mxu0 0.0
  %122 = vmatpush1.msra.mxu0 0.0
  %123 = vmatprep.subr.mxu0 0.0
  %124 = vmatpush1.msra.mxu0 0.0
  %125 = vmatprep.subr.mxu0 0.0
  %126 = vmatpush1.msra.mxu0 0.0
  %127 = vmatprep.subr.mxu0 0.0
  %128 = vmatpush1.msra.mxu0 0.0
  %129 = vmatprep.subr.mxu0 0.0
  %130 = vmatpush1.msra.mxu0 0.0
  %131 = vmatprep.subr.mxu0 0.0
  %132 = vmatpush1.msra.mxu0 0.0
  %133 = vmatprep.subr.mxu0 0.0
  %134 = vmatpush1.msra.mxu0 0.0
  %135 = vmatprep.mubr.f32.mxu0 0.0
  %136 = vmatmul.mubr.f32.gmra.mrb[0].mxu0 %v66
  %v137 = vpop.f32.mrb[0].mxu0
  %v138 = vadd.f32 %v63, %v137
  %v139 = vpop.f32.mrb[0].mxu0
  %140 = vmatprep.mubr.f32.mxu0 0.0
  %141 = vmatmul.mubr.f32.gmra.mrb[0].mxu0 %v69
  %v142 = vpop.f32.mrb[0].mxu0
  %v143 = vadd.f32 %v63, %v142
  %v144 = vpop.f32.mrb[0].mxu0
  %145 = vdwg.mxu0
  %146 = vset.pattern.permute.xlu0 0
  %147 = vperm.xlu0 %146, %v14
  %v148 = vpop.permute.xlu0 %147
  %149 = vset.pattern.permute.xlu0 0
  %150 = vperm.xlu0 %149, %v15
  %v151 = vpop.permute.xlu0 %150
  %vm152 = vcmp.eq.s32.totalorder %v148, %v47
  %vm153 = vcmp.eq.s32.totalorder %v151, %v47
  %v154 = vsel %vm152, 1, 0
  %v155 = vsel %vm153, 1, 0
  %v156 = vcvt.s32.f32 %v154
  %v157 = vcvt.s32.f32 %v155
  %v158 = vlaneseq
  %v159 = vshrl.u32 %v158, 7
  %v160 = vsub.s32 2, %v159
  %v161 = vrot.slane %v45, %v160
  %vm162 = vcmask 392192
  %v164 = vsel %vm162, %v156, 0
  %v167 = vsel %vm162, %v157, 0
  %169 = vmatprep.subr.mxu0 0.0
  %170 = vmatpush1.msra.mxu0 %v29
  %171 = vmatprep.subr.mxu0 0.0
  %172 = vmatpush1.msra.mxu0 %v30
  %173 = vmatprep.subr.mxu0 0.0
  %174 = vmatpush1.msra.mxu0 %v31
  %175 = vmatprep.subr.mxu0 0.0
  %176 = vmatpush1.msra.mxu0 %v32
  %177 = vmatprep.subr.mxu0 0.0
  %178 = vmatpush1.msra.mxu0 %v33
  %179 = vmatprep.subr.mxu0 0.0
  %180 = vmatpush1.msra.mxu0 %v34
  %181 = vmatprep.subr.mxu0 0.0
  %182 = vmatpush1.msra.mxu0 0.0
  %183 = vmatprep.subr.mxu0 0.0
  %184 = vmatpush1.msra.mxu0 0.0
  %185 = vmatprep.subr.mxu0 0.0
  %186 = vmatpush1.msra.mxu0 0.0
  %187 = vmatprep.subr.mxu0 0.0
  %188 = vmatpush1.msra.mxu0 0.0
  %189 = vmatprep.subr.mxu0 0.0
  %190 = vmatpush1.msra.mxu0 0.0
  %191 = vmatprep.subr.mxu0 0.0
  %192 = vmatpush1.msra.mxu0 0.0
  %193 = vmatprep.subr.mxu0 0.0
  %194 = vmatpush1.msra.mxu0 0.0
  %195 = vmatprep.subr.mxu0 0.0
  %196 = vmatpush1.msra.mxu0 0.0
  %197 = vmatprep.subr.mxu0 0.0
  %198 = vmatpush1.msra.mxu0 0.0
  %199 = vmatprep.subr.mxu0 0.0
  %200 = vmatpush1.msra.mxu0 0.0
  %201 = vmatprep.subr.mxu0 0.0
  %202 = vmatpush1.msra.mxu0 0.0
  %203 = vmatprep.subr.mxu0 0.0
  %204 = vmatpush1.msra.mxu0 0.0
  %205 = vmatprep.subr.mxu0 0.0
  %206 = vmatpush1.msra.mxu0 0.0
  %207 = vmatprep.subr.mxu0 0.0
  %208 = vmatpush1.msra.mxu0 0.0
  %209 = vmatprep.subr.mxu0 0.0
  %210 = vmatpush1.msra.mxu0 0.0
  %211 = vmatprep.subr.mxu0 0.0
  %212 = vmatpush1.msra.mxu0 0.0
  %213 = vmatprep.subr.mxu0 0.0
  %214 = vmatpush1.msra.mxu0 0.0
  %215 = vmatprep.subr.mxu0 0.0
  %216 = vmatpush1.msra.mxu0 0.0
  %217 = vmatprep.subr.mxu0 0.0
  %218 = vmatpush1.msra.mxu0 0.0
  %219 = vmatprep.subr.mxu0 0.0
  %220 = vmatpush1.msra.mxu0 0.0
  %221 = vmatprep.subr.mxu0 0.0
  %222 = vmatpush1.msra.mxu0 0.0
  %223 = vmatprep.subr.mxu0 0.0
  %224 = vmatpush1.msra.mxu0 0.0
  %225 = vmatprep.subr.mxu0 0.0
  %226 = vmatpush1.msra.mxu0 0.0
  %227 = vmatprep.subr.mxu0 0.0
  %228 = vmatpush1.msra.mxu0 0.0
  %229 = vmatprep.subr.mxu0 0.0
  %230 = vmatpush1.msra.mxu0 0.0
  %231 = vmatprep.subr.mxu0 0.0
  %232 = vmatpush1.msra.mxu0 0.0
  %233 = vmatprep.mubr.f32.mxu0 0.0
  %234 = vmatmul.mubr.f32.gmra.mrb[0].mxu0 %v164
  %v235 = vpop.f32.mrb[0].mxu0
  %v236 = vadd.f32 %v161, %v235
  %v237 = vpop.f32.mrb[0].mxu0
  %238 = vmatprep.mubr.f32.mxu0 0.0
  %239 = vmatmul.mubr.f32.gmra.mrb[0].mxu0 %v167
  %v240 = vpop.f32.mrb[0].mxu0
  %v241 = vadd.f32 %v161, %v240
  %v242 = vpop.f32.mrb[0].mxu0
  %243 = vdwg.mxu0
  %vm244 = vcmask 261120
  %v246 = vsel %vm244, 0, 0
  %248 = vmatprep.subr.bf16.mxu0 0
  %249 = vmatpush1.bf16.msra.mxu0 %v27
  %250 = vmatprep.subr.bf16.mxu0 0
  %251 = vmatpush1.bf16.msra.mxu0 %v28
  %252 = vmatprep.subr.bf16.mxu0 0
  %253 = vmatpush1.bf16.msra.mxu0 0
  %254 = vmatprep.subr.bf16.mxu0 0
  %255 = vmatpush1.bf16.msra.mxu0 0
  %256 = vmatprep.subr.bf16.mxu0 0
  %257 = vmatpush1.bf16.msra.mxu0 0
  %258 = vmatprep.subr.bf16.mxu0 0
  %259 = vmatpush1.bf16.msra.mxu0 0
  %260 = vmatprep.subr.bf16.mxu0 0
  %261 = vmatpush1.bf16.msra.mxu0 0
  %262 = vmatprep.subr.bf16.mxu0 0
  %263 = vmatpush1.bf16.msra.mxu0 0
  %264 = vmatprep.subr.bf16.mxu0 0
  %265 = vmatpush1.bf16.msra.mxu0 0
  %266 = vmatprep.subr.bf16.mxu0 0
  %267 = vmatpush1.bf16.msra.mxu0 0
  %268 = vmatprep.subr.bf16.mxu0 0
  %269 = vmatpush1.bf16.msra.mxu0 0
  %270 = vmatprep.subr.bf16.mxu0 0
  %271 = vmatpush1.bf16.msra.mxu0 0
  %272 = vmatprep.subr.bf16.mxu0 0
  %273 = vmatpush1.bf16.msra.mxu0 0
  %274 = vmatprep.subr.bf16.mxu0 0
  %275 = vmatpush1.bf16.msra.mxu0 0
  %276 = vmatprep.subr.bf16.mxu0 0
  %277 = vmatpush1.bf16.msra.mxu0 0
  %278 = vmatprep.subr.bf16.mxu0 0
  %279 = vmatpush1.bf16.msra.mxu0 0
  %280 = vmatprep.mubr.bf16.mxu0 0
  %281 = vmatmul.mubr.bf16.gmra.mrb[0].mxu0 %v246
  %v282 = vpop.f32.mrb[0].mxu0
  %v283 = vadd.f32 0.0, %v282
  %v284 = vpop.f32.mrb[0].mxu0
  %v285 = vpop.f32.mrb[0].mxu0
  %v286 = vpop.f32.mrb[0].mxu0
  %287 = vdwg.mxu0
  %v288 = vadd.f32 %v138, %v283
  %v289 = vxor.u32 %v288, 2147483648
  %v290 = vmul.f32 %v289, 1.442695
  %v291 = vpow.pop %v290
  %v292 = vadd.f32 %v291, 1.0
  %v293 = vrcp.pop %v292
  %v294 = vmul.f32 1.0, %v293
  %v295 = vlaneseq
  %v296 = vshrl.u32 %v295, 7
  %v297 = vsub.s32 1, %v296
  %v298 = vrot.slane %v45, %v297
  %300 = vrot.lane.b32.xlu0 %v298, 64
  %v301 = vpop.permute.xlu0 %300
  %v303 = vadd.f32 %v283, %v301
  %305 = vrot.lane.b32.xlu0 %v303, 64
  %v306 = vpop.permute.xlu0 %305
  %v308 = vmul.f32 %v294, %v306
  %310 = vrot.lane.b32.xlu0 %v308, 64
  %v311 = vpop.permute.xlu0 %310
  %v313 = vadd.f32 %v138, %v311
  %v314 = vtanh.pop %v313
  %v315 = vsub.f32 1.0, %v294
  %317 = vrot.lane.b32.xlu0 %v314, 96
  %v318 = vpop.permute.xlu0 %317
  %v320 = vmul.f32 %v315, %v318
  %v321 = vmul.f32 %v294, 0.0
  %v322 = vadd.f32 %v320, %v321
  %v323 = vpack.c.bf16 %v322, %v322
  %325 = vrot.lane.b32.xlu0 %v323, 96
  %v326 = vpop.permute.xlu0 %325
  %v328 = vsel %vm244, %v326, 0
  %330 = vmatprep.subr.bf16.mxu0 0
  %331 = vmatpush1.bf16.msra.mxu0 %v27
  %332 = vmatprep.subr.bf16.mxu0 0
  %333 = vmatpush1.bf16.msra.mxu0 %v28
  %334 = vmatprep.subr.bf16.mxu0 0
  %335 = vmatpush1.bf16.msra.mxu0 0
  %336 = vmatprep.subr.bf16.mxu0 0
  %337 = vmatpush1.bf16.msra.mxu0 0
  %338 = vmatprep.subr.bf16.mxu0 0
  %339 = vmatpush1.bf16.msra.mxu0 0
  %340 = vmatprep.subr.bf16.mxu0 0
  %341 = vmatpush1.bf16.msra.mxu0 0
  %342 = vmatprep.subr.bf16.mxu0 0
  %343 = vmatpush1.bf16.msra.mxu0 0
  %344 = vmatprep.subr.bf16.mxu0 0
  %345 = vmatpush1.bf16.msra.mxu0 0
  %346 = vmatprep.subr.bf16.mxu0 0
  %347 = vmatpush1.bf16.msra.mxu0 0
  %348 = vmatprep.subr.bf16.mxu0 0
  %349 = vmatpush1.bf16.msra.mxu0 0
  %350 = vmatprep.subr.bf16.mxu0 0
  %351 = vmatpush1.bf16.msra.mxu0 0
  %352 = vmatprep.subr.bf16.mxu0 0
  %353 = vmatpush1.bf16.msra.mxu0 0
  %354 = vmatprep.subr.bf16.mxu0 0
  %355 = vmatpush1.bf16.msra.mxu0 0
  %356 = vmatprep.subr.bf16.mxu0 0
  %357 = vmatpush1.bf16.msra.mxu0 0
  %358 = vmatprep.subr.bf16.mxu0 0
  %359 = vmatpush1.bf16.msra.mxu0 0
  %360 = vmatprep.subr.bf16.mxu0 0
  %361 = vmatpush1.bf16.msra.mxu0 0
  %362 = vmatprep.mubr.bf16.mxu0 0
  %363 = vmatmul.mubr.bf16.gmra.mrb[0].mxu0 %v328
  %v364 = vpop.f32.mrb[0].mxu0
  %v365 = vadd.f32 0.0, %v364
  %v366 = vpop.f32.mrb[0].mxu0
  %v367 = vpop.f32.mrb[0].mxu0
  %v368 = vpop.f32.mrb[0].mxu0
  %369 = vdwg.mxu0
  %v371 = vrot.slane %v365, 6
  %v373 = vadd.f32 %v138, %v371
  %v374 = vxor.u32 %v373, 2147483648
  %v375 = vmul.f32 %v374, 1.442695
  %v376 = vpow.pop %v375
  %v377 = vadd.f32 %v376, 1.0
  %v378 = vrcp.pop %v377
  %v379 = vmul.f32 1.0, %v378
  %v380 = vadd.f32 %v365, %v301
  %v382 = vrot.slane %v380, 6
  %383 = vrot.lane.b32.xlu0 %v382, 64
  %v384 = vpop.permute.xlu0 %383
  %v386 = vmul.f32 %v379, %v384
  %388 = vrot.lane.b32.xlu0 %v386, 64
  %v389 = vpop.permute.xlu0 %388
  %v391 = vadd.f32 %v138, %v389
  %v392 = vtanh.pop %v391
  %v393 = vsub.f32 1.0, %v379
  %395 = vrot.lane.b32.xlu0 %v392, 96
  %v396 = vpop.permute.xlu0 %395
  %v398 = vmul.f32 %v393, %v396
  %v400 = vrot.slane %v322, 6
  %v402 = vmul.f32 %v379, %v400
  %v403 = vadd.f32 %v398, %v402
  %v404 = vpack.c.bf16 %v403, %v403
  %v406 = vrot.slane %v404, 1
  %407 = vrot.lane.b32.xlu0 %v406, 96
  %v408 = vpop.permute.xlu0 %407
  %v410 = vsel %vm244, %v408, 0
  %412 = vmatprep.subr.bf16.mxu0 0
  %413 = vmatpush1.bf16.msra.mxu0 %v27
  %414 = vmatprep.subr.bf16.mxu0 0
  %415 = vmatpush1.bf16.msra.mxu0 %v28
  %416 = vmatprep.subr.bf16.mxu0 0
  %417 = vmatpush1.bf16.msra.mxu0 0
  %418 = vmatprep.subr.bf16.mxu0 0
  %419 = vmatpush1.bf16.msra.mxu0 0
  %420 = vmatprep.subr.bf16.mxu0 0
  %421 = vmatpush1.bf16.msra.mxu0 0
  %422 = vmatprep.subr.bf16.mxu0 0
  %423 = vmatpush1.bf16.msra.mxu0 0
  %424 = vmatprep.subr.bf16.mxu0 0
  %425 = vmatpush1.bf16.msra.mxu0 0
  %426 = vmatprep.subr.bf16.mxu0 0
  %427 = vmatpush1.bf16.msra.mxu0 0
  %428 = vmatprep.subr.bf16.mxu0 0
  %429 = vmatpush1.bf16.msra.mxu0 0
  %430 = vmatprep.subr.bf16.mxu0 0
  %431 = vmatpush1.bf16.msra.mxu0 0
  %432 = vmatprep.subr.bf16.mxu0 0
  %433 = vmatpush1.bf16.msra.mxu0 0
  %434 = vmatprep.subr.bf16.mxu0 0
  %435 = vmatpush1.bf16.msra.mxu0 0
  %436 = vmatprep.subr.bf16.mxu0 0
  %437 = vmatpush1.bf16.msra.mxu0 0
  %438 = vmatprep.subr.bf16.mxu0 0
  %439 = vmatpush1.bf16.msra.mxu0 0
  %440 = vmatprep.subr.bf16.mxu0 0
  %441 = vmatpush1.bf16.msra.mxu0 0
  %442 = vmatprep.subr.bf16.mxu0 0
  %443 = vmatpush1.bf16.msra.mxu0 0
  %444 = vmatprep.mubr.bf16.mxu0 0
  %445 = vmatmul.mubr.bf16.gmra.mrb[0].mxu0 %v410
  %v446 = vpop.f32.mrb[0].mxu0
  %v447 = vadd.f32 0.0, %v446
  %v448 = vpop.f32.mrb[0].mxu0
  %v449 = vpop.f32.mrb[0].mxu0
  %v450 = vpop.f32.mrb[0].mxu0
  %451 = vdwg.mxu0
  %v453 = vrot.slane %v447, 4
  %v455 = vadd.f32 %v138, %v453
  %v456 = vxor.u32 %v455, 2147483648
  %v457 = vmul.f32 %v456, 1.442695
  %v458 = vpow.pop %v457
  %v459 = vadd.f32 %v458, 1.0
  %v460 = vrcp.pop %v459
  %v461 = vmul.f32 1.0, %v460
  %v462 = vadd.f32 %v447, %v301
  %v464 = vrot.slane %v462, 4
  %465 = vrot.lane.b32.xlu0 %v464, 64
  %v466 = vpop.permute.xlu0 %465
  %v468 = vmul.f32 %v461, %v466
  %470 = vrot.lane.b32.xlu0 %v468, 64
  %v471 = vpop.permute.xlu0 %470
  %v473 = vadd.f32 %v138, %v471
  %v474 = vtanh.pop %v473
  %v475 = vsub.f32 1.0, %v461
  %477 = vrot.lane.b32.xlu0 %v474, 96
  %v478 = vpop.permute.xlu0 %477
  %v480 = vmul.f32 %v475, %v478
  %v482 = vrot.slane %v403, 6
  %v484 = vmul.f32 %v461, %v482
  %v485 = vadd.f32 %v480, %v484
  %v486 = vpack.c.bf16 %v485, %v485
  %v488 = vrot.slane %v486, 2
  %489 = vrot.lane.b32.xlu0 %v488, 96
  %v490 = vpop.permute.xlu0 %489
  %v492 = vsel %vm244, %v490, 0
  %494 = vmatprep.subr.bf16.mxu0 0
  %495 = vmatpush1.bf16.msra.mxu0 %v27
  %496 = vmatprep.subr.bf16.mxu0 0
  %497 = vmatpush1.bf16.msra.mxu0 %v28
  %498 = vmatprep.subr.bf16.mxu0 0
  %499 = vmatpush1.bf16.msra.mxu0 0
  %500 = vmatprep.subr.bf16.mxu0 0
  %501 = vmatpush1.bf16.msra.mxu0 0
  %502 = vmatprep.subr.bf16.mxu0 0
  %503 = vmatpush1.bf16.msra.mxu0 0
  %504 = vmatprep.subr.bf16.mxu0 0
  %505 = vmatpush1.bf16.msra.mxu0 0
  %506 = vmatprep.subr.bf16.mxu0 0
  %507 = vmatpush1.bf16.msra.mxu0 0
  %508 = vmatprep.subr.bf16.mxu0 0
  %509 = vmatpush1.bf16.msra.mxu0 0
  %510 = vmatprep.subr.bf16.mxu0 0
  %511 = vmatpush1.bf16.msra.mxu0 0
  %512 = vmatprep.subr.bf16.mxu0 0
  %513 = vmatpush1.bf16.msra.mxu0 0
  %514 = vmatprep.subr.bf16.mxu0 0
  %515 = vmatpush1.bf16.msra.mxu0 0
  %516 = vmatprep.subr.bf16.mxu0 0
  %517 = vmatpush1.bf16.msra.mxu0 0
  %518 = vmatprep.subr.bf16.mxu0 0
  %519 = vmatpush1.bf16.msra.mxu0 0
  %520 = vmatprep.subr.bf16.mxu0 0
  %521 = vmatpush1.bf16.msra.mxu0 0
  %522 = vmatprep.subr.bf16.mxu0 0
  %523 = vmatpush1.bf16.msra.mxu0 0
  %524 = vmatprep.subr.bf16.mxu0 0
  %525 = vmatpush1.bf16.msra.mxu0 0
  %526 = vmatprep.mubr.bf16.mxu0 0
  %527 = vmatmul.mubr.bf16.gmra.mrb[0].mxu0 %v492
  %v528 = vpop.f32.mrb[0].mxu0
  %v529 = vadd.f32 0.0, %v528
  %v530 = vpop.f32.mrb[0].mxu0
  %v531 = vpop.f32.mrb[0].mxu0
  %v532 = vpop.f32.mrb[0].mxu0
  %533 = vdwg.mxu0
  %v535 = vrot.slane %v529, 2
  %v537 = vadd.f32 %v138, %v535
  %v538 = vxor.u32 %v537, 2147483648
  %v539 = vmul.f32 %v538, 1.442695
  %v540 = vpow.pop %v539
  %v541 = vadd.f32 %v540, 1.0
  %v542 = vrcp.pop %v541
  %v543 = vmul.f32 1.0, %v542
  %v544 = vadd.f32 %v529, %v301
  %v546 = vrot.slane %v544, 2
  %547 = vrot.lane.b32.xlu0 %v546, 64
  %v548 = vpop.permute.xlu0 %547
  %v550 = vmul.f32 %v543, %v548
  %552 = vrot.lane.b32.xlu0 %v550, 64
  %v553 = vpop.permute.xlu0 %552
  %v555 = vadd.f32 %v138, %v553
  %v556 = vtanh.pop %v555
  %v557 = vsub.f32 1.0, %v543
  %559 = vrot.lane.b32.xlu0 %v556, 96
  %v560 = vpop.permute.xlu0 %559
  %v562 = vmul.f32 %v557, %v560
  %v564 = vrot.slane %v485, 6
  %v566 = vmul.f32 %v543, %v564
  %v567 = vadd.f32 %v562, %v566
  %v568 = vpack.c.bf16 %v567, %v567
  %v570 = vrot.slane %v568, 3
  %571 = vrot.lane.b32.xlu0 %v570, 96
  %v572 = vpop.permute.xlu0 %571
  %v574 = vsel %vm244, %v572, 0
  %576 = vmatprep.subr.bf16.mxu0 0
  %577 = vmatpush1.bf16.msra.mxu0 %v27
  %578 = vmatprep.subr.bf16.mxu0 0
  %579 = vmatpush1.bf16.msra.mxu0 %v28
  %580 = vmatprep.subr.bf16.mxu0 0
  %581 = vmatpush1.bf16.msra.mxu0 0
  %582 = vmatprep.subr.bf16.mxu0 0
  %583 = vmatpush1.bf16.msra.mxu0 0
  %584 = vmatprep.subr.bf16.mxu0 0
  %585 = vmatpush1.bf16.msra.mxu0 0
  %586 = vmatprep.subr.bf16.mxu0 0
  %587 = vmatpush1.bf16.msra.mxu0 0
  %588 = vmatprep.subr.bf16.mxu0 0
  %589 = vmatpush1.bf16.msra.mxu0 0
  %590 = vmatprep.subr.bf16.mxu0 0
  %591 = vmatpush1.bf16.msra.mxu0 0
  %592 = vmatprep.subr.bf16.mxu0 0
  %593 = vmatpush1.bf16.msra.mxu0 0
  %594 = vmatprep.subr.bf16.mxu0 0
  %595 = vmatpush1.bf16.msra.mxu0 0
  %596 = vmatprep.subr.bf16.mxu0 0
  %597 = vmatpush1.bf16.msra.mxu0 0
  %598 = vmatprep.subr.bf16.mxu0 0
  %599 = vmatpush1.bf16.msra.mxu0 0
  %600 = vmatprep.subr.bf16.mxu0 0
  %601 = vmatpush1.bf16.msra.mxu0 0
  %602 = vmatprep.subr.bf16.mxu0 0
  %603 = vmatpush1.bf16.msra.mxu0 0
  %604 = vmatprep.subr.bf16.mxu0 0
  %605 = vmatpush1.bf16.msra.mxu0 0
  %606 = vmatprep.subr.bf16.mxu0 0
  %607 = vmatpush1.bf16.msra.mxu0 0
  %608 = vmatprep.mubr.bf16.mxu0 0
  %609 = vmatmul.mubr.bf16.gmra.mrb[0].mxu0 %v574
  %v610 = vpop.f32.mrb[0].mxu0
  %v611 = vadd.f32 0.0, %v610
  %v612 = vpop.f32.mrb[0].mxu0
  %v613 = vpop.f32.mrb[0].mxu0
  %v614 = vpop.f32.mrb[0].mxu0
  %615 = vdwg.mxu0
  %v616 = vadd.f32 %v143, %v611
  %v617 = vxor.u32 %v616, 2147483648
  %v618 = vmul.f32 %v617, 1.442695
  %v619 = vpow.pop %v618
  %v620 = vadd.f32 %v619, 1.0
  %v621 = vrcp.pop %v620
  %v622 = vmul.f32 1.0, %v621
  %v623 = vadd.f32 %v611, %v301
  %625 = vrot.lane.b32.xlu0 %v623, 64
  %v626 = vpop.permute.xlu0 %625
  %v628 = vmul.f32 %v622, %v626
  %630 = vrot.lane.b32.xlu0 %v628, 64
  %v631 = vpop.permute.xlu0 %630
  %v633 = vadd.f32 %v143, %v631
  %v634 = vtanh.pop %v633
  %v635 = vsub.f32 1.0, %v622
  %637 = vrot.lane.b32.xlu0 %v634, 96
  %v638 = vpop.permute.xlu0 %637
  %v640 = vmul.f32 %v635, %v638
  %v642 = vrot.slane %v567, 6
  %v644 = vmul.f32 %v622, %v642
  %v645 = vadd.f32 %v640, %v644
  %v646 = vpack.c.bf16 %v645, %v645
  %648 = vrot.lane.b32.xlu0 %v646, 96
  %v649 = vpop.permute.xlu0 %648
  %v651 = vsel %vm244, %v649, 0
  %653 = vmatprep.subr.bf16.mxu0 0
  %654 = vmatpush1.bf16.msra.mxu0 %v27
  %655 = vmatprep.subr.bf16.mxu0 0
  %656 = vmatpush1.bf16.msra.mxu0 %v28
  %657 = vmatprep.subr.bf16.mxu0 0
  %658 = vmatpush1.bf16.msra.mxu0 0
  %659 = vmatprep.subr.bf16.mxu0 0
  %660 = vmatpush1.bf16.msra.mxu0 0
  %661 = vmatprep.subr.bf16.mxu0 0
  %662 = vmatpush1.bf16.msra.mxu0 0
  %663 = vmatprep.subr.bf16.mxu0 0
  %664 = vmatpush1.bf16.msra.mxu0 0
  %665 = vmatprep.subr.bf16.mxu0 0
  %666 = vmatpush1.bf16.msra.mxu0 0
  %667 = vmatprep.subr.bf16.mxu0 0
  %668 = vmatpush1.bf16.msra.mxu0 0
  %669 = vmatprep.subr.bf16.mxu0 0
  %670 = vmatpush1.bf16.msra.mxu0 0
  %671 = vmatprep.subr.bf16.mxu0 0
  %672 = vmatpush1.bf16.msra.mxu0 0
  %673 = vmatprep.subr.bf16.mxu0 0
  %674 = vmatpush1.bf16.msra.mxu0 0
  %675 = vmatprep.subr.bf16.mxu0 0
  %676 = vmatpush1.bf16.msra.mxu0 0
  %677 = vmatprep.subr.bf16.mxu0 0
  %678 = vmatpush1.bf16.msra.mxu0 0
  %679 = vmatprep.subr.bf16.mxu0 0
  %680 = vmatpush1.bf16.msra.mxu0 0
  %681 = vmatprep.subr.bf16.mxu0 0
  %682 = vmatpush1.bf16.msra.mxu0 0
  %683 = vmatprep.subr.bf16.mxu0 0
  %684 = vmatpush1.bf16.msra.mxu0 0
  %685 = vmatprep.mubr.bf16.mxu0 0
  %686 = vmatmul.mubr.bf16.gmra.mrb[0].mxu0 %v651
  %v687 = vpop.f32.mrb[0].mxu0
  %v688 = vadd.f32 0.0, %v687
  %v689 = vpop.f32.mrb[0].mxu0
  %v690 = vpop.f32.mrb[0].mxu0
  %v691 = vpop.f32.mrb[0].mxu0
  %692 = vdwg.mxu0
  %v694 = vrot.slane %v688, 6
  %v696 = vadd.f32 %v143, %v694
  %v697 = vxor.u32 %v696, 2147483648
  %v698 = vmul.f32 %v697, 1.442695
  %v699 = vpow.pop %v698
  %v700 = vadd.f32 %v699, 1.0
  %v701 = vrcp.pop %v700
  %v702 = vmul.f32 1.0, %v701
  %v703 = vadd.f32 %v688, %v301
  %v705 = vrot.slane %v703, 6
  %706 = vrot.lane.b32.xlu0 %v705, 64
  %v707 = vpop.permute.xlu0 %706
  %v709 = vmul.f32 %v702, %v707
  %711 = vrot.lane.b32.xlu0 %v709, 64
  %v712 = vpop.permute.xlu0 %711
  %v714 = vadd.f32 %v143, %v712
  %v715 = vtanh.pop %v714
  %v716 = vsub.f32 1.0, %v702
  %718 = vrot.lane.b32.xlu0 %v715, 96
  %v719 = vpop.permute.xlu0 %718
  %v721 = vmul.f32 %v716, %v719
  %v723 = vrot.slane %v645, 6
  %v725 = vmul.f32 %v702, %v723
  %v726 = vadd.f32 %v721, %v725
  %v727 = vpack.c.bf16 %v726, %v726
  %v729 = vrot.slane %v727, 1
  %730 = vrot.lane.b32.xlu0 %v729, 96
  %v731 = vpop.permute.xlu0 %730
  %v733 = vsel %vm244, %v731, 0
  %735 = vmatprep.subr.bf16.mxu0 0
  %736 = vmatpush1.bf16.msra.mxu0 %v27
  %737 = vmatprep.subr.bf16.mxu0 0
  %738 = vmatpush1.bf16.msra.mxu0 %v28
  %739 = vmatprep.subr.bf16.mxu0 0
  %740 = vmatpush1.bf16.msra.mxu0 0
  %741 = vmatprep.subr.bf16.mxu0 0
  %742 = vmatpush1.bf16.msra.mxu0 0
  %743 = vmatprep.subr.bf16.mxu0 0
  %744 = vmatpush1.bf16.msra.mxu0 0
  %745 = vmatprep.subr.bf16.mxu0 0
  %746 = vmatpush1.bf16.msra.mxu0 0
  %747 = vmatprep.subr.bf16.mxu0 0
  %748 = vmatpush1.bf16.msra.mxu0 0
  %749 = vmatprep.subr.bf16.mxu0 0
  %750 = vmatpush1.bf16.msra.mxu0 0
  %751 = vmatprep.subr.bf16.mxu0 0
  %752 = vmatpush1.bf16.msra.mxu0 0
  %753 = vmatprep.subr.bf16.mxu0 0
  %754 = vmatpush1.bf16.msra.mxu0 0
  %755 = vmatprep.subr.bf16.mxu0 0
  %756 = vmatpush1.bf16.msra.mxu0 0
  %757 = vmatprep.subr.bf16.mxu0 0
  %758 = vmatpush1.bf16.msra.mxu0 0
  %759 = vmatprep.subr.bf16.mxu0 0
  %760 = vmatpush1.bf16.msra.mxu0 0
  %761 = vmatprep.subr.bf16.mxu0 0
  %762 = vmatpush1.bf16.msra.mxu0 0
  %763 = vmatprep.subr.bf16.mxu0 0
  %764 = vmatpush1.bf16.msra.mxu0 0
  %765 = vmatprep.subr.bf16.mxu0 0
  %766 = vmatpush1.bf16.msra.mxu0 0
  %767 = vmatprep.mubr.bf16.mxu0 0
  %768 = vmatmul.mubr.bf16.gmra.mrb[0].mxu0 %v733
  %v769 = vpop.f32.mrb[0].mxu0
  %v770 = vadd.f32 0.0, %v769
  %v771 = vpop.f32.mrb[0].mxu0
  %v772 = vpop.f32.mrb[0].mxu0
  %v773 = vpop.f32.mrb[0].mxu0
  %774 = vdwg.mxu0
  %v776 = vrot.slane %v770, 4
  %v778 = vadd.f32 %v143, %v776
  %v779 = vxor.u32 %v778, 2147483648
  %v780 = vmul.f32 %v779, 1.442695
  %v781 = vpow.pop %v780
  %v782 = vadd.f32 %v781, 1.0
  %v783 = vrcp.pop %v782
  %v784 = vmul.f32 1.0, %v783
  %v785 = vadd.f32 %v770, %v301
  %v787 = vrot.slane %v785, 4
  %788 = vrot.lane.b32.xlu0 %v787, 64
  %v789 = vpop.permute.xlu0 %788
  %v791 = vmul.f32 %v784, %v789
  %793 = vrot.lane.b32.xlu0 %v791, 64
  %v794 = vpop.permute.xlu0 %793
  %v796 = vadd.f32 %v143, %v794
  %v797 = vtanh.pop %v796
  %v798 = vsub.f32 1.0, %v784
  %800 = vrot.lane.b32.xlu0 %v797, 96
  %v801 = vpop.permute.xlu0 %800
  %v803 = vmul.f32 %v798, %v801
  %v805 = vrot.slane %v726, 6
  %v807 = vmul.f32 %v784, %v805
  %v808 = vadd.f32 %v803, %v807
  %v809 = vlaneseq
  %v810 = vshrl.u32 %v809, 7
  %v811 = vadd.s32 %v810, 8
  %v812 = vpack.c.bf16 %v808, %v808
  %v814 = vrot.slane %v812, 2
  %815 = vrot.lane.b32.xlu0 %v814, 96
  %v816 = vpop.permute.xlu0 %815
  %v818 = vsel %vm244, %v816, 0
  %820 = vmatprep.subr.bf16.mxu0 0
  %821 = vmatpush1.bf16.msra.mxu0 %v39
  %822 = vmatprep.subr.bf16.mxu0 0
  %823 = vmatpush1.bf16.msra.mxu0 %v40
  %824 = vmatprep.subr.bf16.mxu0 0
  %825 = vmatpush1.bf16.msra.mxu0 0
  %826 = vmatprep.subr.bf16.mxu0 0
  %827 = vmatpush1.bf16.msra.mxu0 0
  %828 = vmatprep.subr.bf16.mxu0 0
  %829 = vmatpush1.bf16.msra.mxu0 0
  %830 = vmatprep.subr.bf16.mxu0 0
  %831 = vmatpush1.bf16.msra.mxu0 0
  %832 = vmatprep.subr.bf16.mxu0 0
  %833 = vmatpush1.bf16.msra.mxu0 0
  %834 = vmatprep.subr.bf16.mxu0 0
  %835 = vmatpush1.bf16.msra.mxu0 0
  %836 = vmatprep.subr.bf16.mxu0 0
  %837 = vmatpush1.bf16.msra.mxu0 0
  %838 = vmatprep.subr.bf16.mxu0 0
  %839 = vmatpush1.bf16.msra.mxu0 0
  %840 = vmatprep.subr.bf16.mxu0 0
  %841 = vmatpush1.bf16.msra.mxu0 0
  %842 = vmatprep.subr.bf16.mxu0 0
  %843 = vmatpush1.bf16.msra.mxu0 0
  %844 = vmatprep.subr.bf16.mxu0 0
  %845 = vmatpush1.bf16.msra.mxu0 0
  %846 = vmatprep.subr.bf16.mxu0 0
  %847 = vmatpush1.bf16.msra.mxu0 0
  %848 = vmatprep.subr.bf16.mxu0 0
  %849 = vmatpush1.bf16.msra.mxu0 0
  %850 = vmatprep.subr.bf16.mxu0 0
  %851 = vmatpush1.bf16.msra.mxu0 0
  %852 = vmatprep.mubr.bf16.mxu0 0
  %853 = vmatmul.mubr.bf16.gmra.mrb[0].mxu0 %v818
  %v854 = vpop.f32.mrb[0].mxu0
  %v855 = vadd.f32 0.0, %v854
  %v856 = vpop.f32.mrb[0].mxu0
  %v857 = vpop.f32.mrb[0].mxu0
  %v858 = vpop.f32.mrb[0].mxu0
  %859 = vdwg.mxu0
  %v860 = vadd.f32 %v236, %v855
  %v861 = vxor.u32 %v860, 2147483648
  %v862 = vmul.f32 %v861, 1.442695
  %v863 = vpow.pop %v862
  %v864 = vadd.f32 %v863, 1.0
  %v865 = vrcp.pop %v864
  %v866 = vmul.f32 1.0, %v865
  %v867 = vlaneseq
  %v868 = vshrl.u32 %v867, 7
  %v869 = vsub.s32 3, %v868
  %v870 = vrot.slane %v45, %v869
  %872 = vrot.lane.b32.xlu0 %v870, 64
  %v873 = vpop.permute.xlu0 %872
  %v875 = vadd.f32 %v855, %v873
  %877 = vrot.lane.b32.xlu0 %v875, 64
  %v878 = vpop.permute.xlu0 %877
  %v880 = vmul.f32 %v866, %v878
  %882 = vrot.lane.b32.xlu0 %v880, 64
  %v883 = vpop.permute.xlu0 %882
  %v885 = vadd.f32 %v236, %v883
  %v886 = vtanh.pop %v885
  %v887 = vsub.f32 1.0, %v866
  %889 = vrot.lane.b32.xlu0 %v886, 96
  %v890 = vpop.permute.xlu0 %889
  %v892 = vmul.f32 %v887, %v890
  %v894 = vrot.slane %v808, 4
  %v896 = vmul.f32 %v866, %v894
  %v897 = vadd.f32 %v892, %v896
  %vm898 = vcmp.eq.s32.totalorder %v810, 0
  %vm899 = vcmp.eq.s32.totalorder %v811, 0
  %v900 = vlaneseq
  %v901 = vshrl.u32 %v900, 7
  %v902 = vsub.s32 0, %v901
  %v903 = vrot.slane %v897, %v902
  %v904 = vsel %vm898, %v903, 0.0
  %v905 = vsel %vm899, %v903, 0.0
  %vm906 = vcmp.eq.s32.totalorder %v810, 1
  %vm907 = vcmp.eq.s32.totalorder %v811, 1
  %v908 = vlaneseq
  %v909 = vshrl.u32 %v908, 7
  %v910 = vsub.s32 1, %v909
  %v911 = vrot.slane %v897, %v910
  %v912 = vsel %vm906, %v911, %v904
  %v913 = vsel %vm907, %v911, %v905
  %v914 = vpack.c.bf16 %v897, %v897
  %916 = vrot.lane.b32.xlu0 %v914, 96
  %v917 = vpop.permute.xlu0 %916
  %v919 = vsel %vm244, %v917, 0
  %921 = vmatprep.subr.bf16.mxu0 0
  %922 = vmatpush1.bf16.msra.mxu0 %v39
  %923 = vmatprep.subr.bf16.mxu0 0
  %924 = vmatpush1.bf16.msra.mxu0 %v40
  %925 = vmatprep.subr.bf16.mxu0 0
  %926 = vmatpush1.bf16.msra.mxu0 0
  %927 = vmatprep.subr.bf16.mxu0 0
  %928 = vmatpush1.bf16.msra.mxu0 0
  %929 = vmatprep.subr.bf16.mxu0 0
  %930 = vmatpush1.bf16.msra.mxu0 0
  %931 = vmatprep.subr.bf16.mxu0 0
  %932 = vmatpush1.bf16.msra.mxu0 0
  %933 = vmatprep.subr.bf16.mxu0 0
  %934 = vmatpush1.bf16.msra.mxu0 0
  %935 = vmatprep.subr.bf16.mxu0 0
  %936 = vmatpush1.bf16.msra.mxu0 0
  %937 = vmatprep.subr.bf16.mxu0 0
  %938 = vmatpush1.bf16.msra.mxu0 0
  %939 = vmatprep.subr.bf16.mxu0 0
  %940 = vmatpush1.bf16.msra.mxu0 0
  %941 = vmatprep.subr.bf16.mxu0 0
  %942 = vmatpush1.bf16.msra.mxu0 0
  %943 = vmatprep.subr.bf16.mxu0 0
  %944 = vmatpush1.bf16.msra.mxu0 0
  %945 = vmatprep.subr.bf16.mxu0 0
  %946 = vmatpush1.bf16.msra.mxu0 0
  %947 = vmatprep.subr.bf16.mxu0 0
  %948 = vmatpush1.bf16.msra.mxu0 0
  %949 = vmatprep.subr.bf16.mxu0 0
  %950 = vmatpush1.bf16.msra.mxu0 0
  %951 = vmatprep.subr.bf16.mxu0 0
  %952 = vmatpush1.bf16.msra.mxu0 0
  %953 = vmatprep.mubr.bf16.mxu0 0
  %954 = vmatmul.mubr.bf16.gmra.mrb[0].mxu0 %v919
  %v955 = vpop.f32.mrb[0].mxu0
  %v956 = vadd.f32 0.0, %v955
  %v957 = vpop.f32.mrb[0].mxu0
  %v958 = vpop.f32.mrb[0].mxu0
  %v959 = vpop.f32.mrb[0].mxu0
  %960 = vdwg.mxu0
  %v962 = vrot.slane %v956, 6
  %v964 = vadd.f32 %v236, %v962
  %v965 = vxor.u32 %v964, 2147483648
  %v966 = vmul.f32 %v965, 1.442695
  %v967 = vpow.pop %v966
  %v968 = vadd.f32 %v967, 1.0
  %v969 = vrcp.pop %v968
  %v970 = vmul.f32 1.0, %v969
  %v971 = vadd.f32 %v956, %v873
  %v973 = vrot.slane %v971, 6
  %974 = vrot.lane.b32.xlu0 %v973, 64
  %v975 = vpop.permute.xlu0 %974
  %v977 = vmul.f32 %v970, %v975
  %979 = vrot.lane.b32.xlu0 %v977, 64
  %v980 = vpop.permute.xlu0 %979
  %v982 = vadd.f32 %v236, %v980
  %v983 = vtanh.pop %v982
  %v984 = vsub.f32 1.0, %v970
  %986 = vrot.lane.b32.xlu0 %v983, 96
  %v987 = vpop.permute.xlu0 %986
  %v989 = vmul.f32 %v984, %v987
  %v991 = vrot.slane %v897, 6
  %v993 = vmul.f32 %v970, %v991
  %v994 = vadd.f32 %v989, %v993
  %vm995 = vcmp.eq.s32.totalorder %v810, 2
  %vm996 = vcmp.eq.s32.totalorder %v811, 2
  %v997 = vlaneseq
  %v998 = vshrl.u32 %v997, 7
  %v999 = vsub.s32 2, %v998
  %v1000 = vrot.slane %v994, %v999
  %v1001 = vsel %vm995, %v1000, %v912
  %v1002 = vsel %vm996, %v1000, %v913
  %vm1003 = vcmp.eq.s32.totalorder %v810, 3
  %vm1004 = vcmp.eq.s32.totalorder %v811, 3
  %v1005 = vlaneseq
  %v1006 = vshrl.u32 %v1005, 7
  %v1007 = vsub.s32 3, %v1006
  %v1008 = vrot.slane %v994, %v1007
  %v1009 = vsel %vm1003, %v1008, %v1001
  %v1010 = vsel %vm1004, %v1008, %v1002
  %v1011 = vpack.c.bf16 %v994, %v994
  %v1013 = vrot.slane %v1011, 1
  %1014 = vrot.lane.b32.xlu0 %v1013, 96
  %v1015 = vpop.permute.xlu0 %1014
  %v1017 = vsel %vm244, %v1015, 0
  %1019 = vmatprep.subr.bf16.mxu0 0
  %1020 = vmatpush1.bf16.msra.mxu0 %v39
  %1021 = vmatprep.subr.bf16.mxu0 0
  %1022 = vmatpush1.bf16.msra.mxu0 %v40
  %1023 = vmatprep.subr.bf16.mxu0 0
  %1024 = vmatpush1.bf16.msra.mxu0 0
  %1025 = vmatprep.subr.bf16.mxu0 0
  %1026 = vmatpush1.bf16.msra.mxu0 0
  %1027 = vmatprep.subr.bf16.mxu0 0
  %1028 = vmatpush1.bf16.msra.mxu0 0
  %1029 = vmatprep.subr.bf16.mxu0 0
  %1030 = vmatpush1.bf16.msra.mxu0 0
  %1031 = vmatprep.subr.bf16.mxu0 0
  %1032 = vmatpush1.bf16.msra.mxu0 0
  %1033 = vmatprep.subr.bf16.mxu0 0
  %1034 = vmatpush1.bf16.msra.mxu0 0
  %1035 = vmatprep.subr.bf16.mxu0 0
  %1036 = vmatpush1.bf16.msra.mxu0 0
  %1037 = vmatprep.subr.bf16.mxu0 0
  %1038 = vmatpush1.bf16.msra.mxu0 0
  %1039 = vmatprep.subr.bf16.mxu0 0
  %1040 = vmatpush1.bf16.msra.mxu0 0
  %1041 = vmatprep.subr.bf16.mxu0 0
  %1042 = vmatpush1.bf16.msra.mxu0 0
  %1043 = vmatprep.subr.bf16.mxu0 0
  %1044 = vmatpush1.bf16.msra.mxu0 0
  %1045 = vmatprep.subr.bf16.mxu0 0
  %1046 = vmatpush1.bf16.msra.mxu0 0
  %1047 = vmatprep.subr.bf16.mxu0 0
  %1048 = vmatpush1.bf16.msra.mxu0 0
  %1049 = vmatprep.subr.bf16.mxu0 0
  %1050 = vmatpush1.bf16.msra.mxu0 0
  %1051 = vmatprep.mubr.bf16.mxu0 0
  %1052 = vmatmul.mubr.bf16.gmra.mrb[0].mxu0 %v1017
  %v1053 = vpop.f32.mrb[0].mxu0
  %v1054 = vadd.f32 0.0, %v1053
  %v1055 = vpop.f32.mrb[0].mxu0
  %v1056 = vpop.f32.mrb[0].mxu0
  %v1057 = vpop.f32.mrb[0].mxu0
  %1058 = vdwg.mxu0
  %v1060 = vrot.slane %v1054, 4
  %v1062 = vadd.f32 %v236, %v1060
  %v1063 = vxor.u32 %v1062, 2147483648
  %v1064 = vmul.f32 %v1063, 1.442695
  %v1065 = vpow.pop %v1064
  %v1066 = vadd.f32 %v1065, 1.0
  %v1067 = vrcp.pop %v1066
  %v1068 = vmul.f32 1.0, %v1067
  %v1069 = vadd.f32 %v1054, %v873
  %v1071 = vrot.slane %v1069, 4
  %1072 = vrot.lane.b32.xlu0 %v1071, 64
  %v1073 = vpop.permute.xlu0 %1072
  %v1075 = vmul.f32 %v1068, %v1073
  %1077 = vrot.lane.b32.xlu0 %v1075, 64
  %v1078 = vpop.permute.xlu0 %1077
  %v1080 = vadd.f32 %v236, %v1078
  %v1081 = vtanh.pop %v1080
  %v1082 = vsub.f32 1.0, %v1068
  %1084 = vrot.lane.b32.xlu0 %v1081, 96
  %v1085 = vpop.permute.xlu0 %1084
  %v1087 = vmul.f32 %v1082, %v1085
  %v1089 = vrot.slane %v994, 6
  %v1091 = vmul.f32 %v1068, %v1089
  %v1092 = vadd.f32 %v1087, %v1091
  %vm1093 = vcmp.eq.s32.totalorder %v810, 4
  %vm1094 = vcmp.eq.s32.totalorder %v811, 4
  %v1095 = vlaneseq
  %v1096 = vshrl.u32 %v1095, 7
  %v1097 = vsub.s32 4, %v1096
  %v1098 = vrot.slane %v1092, %v1097
  %v1099 = vsel %vm1093, %v1098, %v1009
  %v1100 = vsel %vm1094, %v1098, %v1010
  %vm1101 = vcmp.eq.s32.totalorder %v810, 5
  %vm1102 = vcmp.eq.s32.totalorder %v811, 5
  %v1103 = vlaneseq
  %v1104 = vshrl.u32 %v1103, 7
  %v1105 = vsub.s32 5, %v1104
  %v1106 = vrot.slane %v1092, %v1105
  %v1107 = vsel %vm1101, %v1106, %v1099
  %v1108 = vsel %vm1102, %v1106, %v1100
  %v1109 = vpack.c.bf16 %v1092, %v1092
  %v1111 = vrot.slane %v1109, 2
  %1112 = vrot.lane.b32.xlu0 %v1111, 96
  %v1113 = vpop.permute.xlu0 %1112
  %v1115 = vsel %vm244, %v1113, 0
  %1117 = vmatprep.subr.bf16.mxu0 0
  %1118 = vmatpush1.bf16.msra.mxu0 %v39
  %1119 = vmatprep.subr.bf16.mxu0 0
  %1120 = vmatpush1.bf16.msra.mxu0 %v40
  %1121 = vmatprep.subr.bf16.mxu0 0
  %1122 = vmatpush1.bf16.msra.mxu0 0
  %1123 = vmatprep.subr.bf16.mxu0 0
  %1124 = vmatpush1.bf16.msra.mxu0 0
  %1125 = vmatprep.subr.bf16.mxu0 0
  %1126 = vmatpush1.bf16.msra.mxu0 0
  %1127 = vmatprep.subr.bf16.mxu0 0
  %1128 = vmatpush1.bf16.msra.mxu0 0
  %1129 = vmatprep.subr.bf16.mxu0 0
  %1130 = vmatpush1.bf16.msra.mxu0 0
  %1131 = vmatprep.subr.bf16.mxu0 0
  %1132 = vmatpush1.bf16.msra.mxu0 0
  %1133 = vmatprep.subr.bf16.mxu0 0
  %1134 = vmatpush1.bf16.msra.mxu0 0
  %1135 = vmatprep.subr.bf16.mxu0 0
  %1136 = vmatpush1.bf16.msra.mxu0 0
  %1137 = vmatprep.subr.bf16.mxu0 0
  %1138 = vmatpush1.bf16.msra.mxu0 0
  %1139 = vmatprep.subr.bf16.mxu0 0
  %1140 = vmatpush1.bf16.msra.mxu0 0
  %1141 = vmatprep.subr.bf16.mxu0 0
  %1142 = vmatpush1.bf16.msra.mxu0 0
  %1143 = vmatprep.subr.bf16.mxu0 0
  %1144 = vmatpush1.bf16.msra.mxu0 0
  %1145 = vmatprep.subr.bf16.mxu0 0
  %1146 = vmatpush1.bf16.msra.mxu0 0
  %1147 = vmatprep.subr.bf16.mxu0 0
  %1148 = vmatpush1.bf16.msra.mxu0 0
  %1149 = vmatprep.mubr.bf16.mxu0 0
  %1150 = vmatmul.mubr.bf16.gmra.mrb[0].mxu0 %v1115
  %v1151 = vpop.f32.mrb[0].mxu0
  %v1152 = vadd.f32 0.0, %v1151
  %v1153 = vpop.f32.mrb[0].mxu0
  %v1154 = vpop.f32.mrb[0].mxu0
  %v1155 = vpop.f32.mrb[0].mxu0
  %1156 = vdwg.mxu0
  %v1158 = vrot.slane %v1152, 2
  %v1160 = vadd.f32 %v236, %v1158
  %v1161 = vxor.u32 %v1160, 2147483648
  %v1162 = vmul.f32 %v1161, 1.442695
  %v1163 = vpow.pop %v1162
  %v1164 = vadd.f32 %v1163, 1.0
  %v1165 = vrcp.pop %v1164
  %v1166 = vmul.f32 1.0, %v1165
  %v1167 = vadd.f32 %v1152, %v873
  %v1169 = vrot.slane %v1167, 2
  %1170 = vrot.lane.b32.xlu0 %v1169, 64
  %v1171 = vpop.permute.xlu0 %1170
  %v1173 = vmul.f32 %v1166, %v1171
  %1175 = vrot.lane.b32.xlu0 %v1173, 64
  %v1176 = vpop.permute.xlu0 %1175
  %v1178 = vadd.f32 %v236, %v1176
  %v1179 = vtanh.pop %v1178
  %v1180 = vsub.f32 1.0, %v1166
  %1182 = vrot.lane.b32.xlu0 %v1179, 96
  %v1183 = vpop.permute.xlu0 %1182
  %v1185 = vmul.f32 %v1180, %v1183
  %v1187 = vrot.slane %v1092, 6
  %v1189 = vmul.f32 %v1166, %v1187
  %v1190 = vadd.f32 %v1185, %v1189
  %vm1191 = vcmp.eq.s32.totalorder %v810, 6
  %vm1192 = vcmp.eq.s32.totalorder %v811, 6
  %v1193 = vlaneseq
  %v1194 = vshrl.u32 %v1193, 7
  %v1195 = vsub.s32 6, %v1194
  %v1196 = vrot.slane %v1190, %v1195
  %v1197 = vsel %vm1191, %v1196, %v1107
  %v1198 = vsel %vm1192, %v1196, %v1108
  %vm1199 = vcmp.eq.s32.totalorder %v810, 7
  %vm1200 = vcmp.eq.s32.totalorder %v811, 7
  %v1201 = vlaneseq
  %v1202 = vshrl.u32 %v1201, 7
  %v1203 = vsub.s32 7, %v1202
  %v1204 = vrot.slane %v1190, %v1203
  %v1205 = vsel %vm1199, %v1204, %v1197
  %v1206 = vsel %vm1200, %v1204, %v1198
  %v1207 = vpack.c.bf16 %v1190, %v1190
  %v1209 = vrot.slane %v1207, 3
  %1210 = vrot.lane.b32.xlu0 %v1209, 96
  %v1211 = vpop.permute.xlu0 %1210
  %v1213 = vsel %vm244, %v1211, 0
  %1215 = vmatprep.subr.bf16.mxu0 0
  %1216 = vmatpush1.bf16.msra.mxu0 %v39
  %1217 = vmatprep.subr.bf16.mxu0 0
  %1218 = vmatpush1.bf16.msra.mxu0 %v40
  %1219 = vmatprep.subr.bf16.mxu0 0
  %1220 = vmatpush1.bf16.msra.mxu0 0
  %1221 = vmatprep.subr.bf16.mxu0 0
  %1222 = vmatpush1.bf16.msra.mxu0 0
  %1223 = vmatprep.subr.bf16.mxu0 0
  %1224 = vmatpush1.bf16.msra.mxu0 0
  %1225 = vmatprep.subr.bf16.mxu0 0
  %1226 = vmatpush1.bf16.msra.mxu0 0
  %1227 = vmatprep.subr.bf16.mxu0 0
  %1228 = vmatpush1.bf16.msra.mxu0 0
  %1229 = vmatprep.subr.bf16.mxu0 0
  %1230 = vmatpush1.bf16.msra.mxu0 0
  %1231 = vmatprep.subr.bf16.mxu0 0
  %1232 = vmatpush1.bf16.msra.mxu0 0
  %1233 = vmatprep.subr.bf16.mxu0 0
  %1234 = vmatpush1.bf16.msra.mxu0 0
  %1235 = vmatprep.subr.bf16.mxu0 0
  %1236 = vmatpush1.bf16.msra.mxu0 0
  %1237 = vmatprep.subr.bf16.mxu0 0
  %1238 = vmatpush1.bf16.msra.mxu0 0
  %1239 = vmatprep.subr.bf16.mxu0 0
  %1240 = vmatpush1.bf16.msra.mxu0 0
  %1241 = vmatprep.subr.bf16.mxu0 0
  %1242 = vmatpush1.bf16.msra.mxu0 0
  %1243 = vmatprep.subr.bf16.mxu0 0
  %1244 = vmatpush1.bf16.msra.mxu0 0
  %1245 = vmatprep.subr.bf16.mxu0 0
  %1246 = vmatpush1.bf16.msra.mxu0 0
  %1247 = vmatprep.mubr.bf16.mxu0 0
  %1248 = vmatmul.mubr.bf16.gmra.mrb[0].mxu0 %v1213
  %v1249 = vpop.f32.mrb[0].mxu0
  %v1250 = vadd.f32 0.0, %v1249
  %v1251 = vpop.f32.mrb[0].mxu0
  %v1252 = vpop.f32.mrb[0].mxu0
  %v1253 = vpop.f32.mrb[0].mxu0
  %1254 = vdwg.mxu0
  %v1255 = vadd.f32 %v241, %v1250
  %v1256 = vxor.u32 %v1255, 2147483648
  %v1257 = vmul.f32 %v1256, 1.442695
  %v1258 = vpow.pop %v1257
  %v1259 = vadd.f32 %v1258, 1.0
  %v1260 = vrcp.pop %v1259
  %v1261 = vmul.f32 1.0, %v1260
  %v1262 = vadd.f32 %v1250, %v873
  %1264 = vrot.lane.b32.xlu0 %v1262, 64
  %v1265 = vpop.permute.xlu0 %1264
  %v1267 = vmul.f32 %v1261, %v1265
  %1269 = vrot.lane.b32.xlu0 %v1267, 64
  %v1270 = vpop.permute.xlu0 %1269
  %v1272 = vadd.f32 %v241, %v1270
  %v1273 = vtanh.pop %v1272
  %v1274 = vsub.f32 1.0, %v1261
  %1276 = vrot.lane.b32.xlu0 %v1273, 96
  %v1277 = vpop.permute.xlu0 %1276
  %v1279 = vmul.f32 %v1274, %v1277
  %v1281 = vrot.slane %v1190, 6
  %v1283 = vmul.f32 %v1261, %v1281
  %v1284 = vadd.f32 %v1279, %v1283
  %vm1285 = vcmp.eq.s32.totalorder %v810, 8
  %vm1286 = vcmp.eq.s32.totalorder %v811, 8
  %v1287 = vlaneseq
  %v1288 = vshrl.u32 %v1287, 7
  %v1289 = vsub.s32 0, %v1288
  %v1290 = vrot.slane %v1284, %v1289
  %v1291 = vsel %vm1285, %v1290, %v1205
  %v1292 = vsel %vm1286, %v1290, %v1206
  %vm1293 = vcmp.eq.s32.totalorder %v810, 9
  %vm1294 = vcmp.eq.s32.totalorder %v811, 9
  %v1295 = vlaneseq
  %v1296 = vshrl.u32 %v1295, 7
  %v1297 = vsub.s32 1, %v1296
  %v1298 = vrot.slane %v1284, %v1297
  %v1299 = vsel %vm1293, %v1298, %v1291
  %v1300 = vsel %vm1294, %v1298, %v1292
  %v1301 = vpack.c.bf16 %v1284, %v1284
  %1303 = vrot.lane.b32.xlu0 %v1301, 96
  %v1304 = vpop.permute.xlu0 %1303
  %v1306 = vsel %vm244, %v1304, 0
  %1308 = vmatprep.subr.bf16.mxu0 0
  %1309 = vmatpush1.bf16.msra.mxu0 %v39
  %1310 = vmatprep.subr.bf16.mxu0 0
  %1311 = vmatpush1.bf16.msra.mxu0 %v40
  %1312 = vmatprep.subr.bf16.mxu0 0
  %1313 = vmatpush1.bf16.msra.mxu0 0
  %1314 = vmatprep.subr.bf16.mxu0 0
  %1315 = vmatpush1.bf16.msra.mxu0 0
  %1316 = vmatprep.subr.bf16.mxu0 0
  %1317 = vmatpush1.bf16.msra.mxu0 0
  %1318 = vmatprep.subr.bf16.mxu0 0
  %1319 = vmatpush1.bf16.msra.mxu0 0
  %1320 = vmatprep.subr.bf16.mxu0 0
  %1321 = vmatpush1.bf16.msra.mxu0 0
  %1322 = vmatprep.subr.bf16.mxu0 0
  %1323 = vmatpush1.bf16.msra.mxu0 0
  %1324 = vmatprep.subr.bf16.mxu0 0
  %1325 = vmatpush1.bf16.msra.mxu0 0
  %1326 = vmatprep.subr.bf16.mxu0 0
  %1327 = vmatpush1.bf16.msra.mxu0 0
  %1328 = vmatprep.subr.bf16.mxu0 0
  %1329 = vmatpush1.bf16.msra.mxu0 0
  %1330 = vmatprep.subr.bf16.mxu0 0
  %1331 = vmatpush1.bf16.msra.mxu0 0
  %1332 = vmatprep.subr.bf16.mxu0 0
  %1333 = vmatpush1.bf16.msra.mxu0 0
  %1334 = vmatprep.subr.bf16.mxu0 0
  %1335 = vmatpush1.bf16.msra.mxu0 0
  %1336 = vmatprep.subr.bf16.mxu0 0
  %1337 = vmatpush1.bf16.msra.mxu0 0
  %1338 = vmatprep.subr.bf16.mxu0 0
  %1339 = vmatpush1.bf16.msra.mxu0 0
  %1340 = vmatprep.mubr.bf16.mxu0 0
  %1341 = vmatmul.mubr.bf16.gmra.mrb[0].mxu0 %v1306
  %v1342 = vpop.f32.mrb[0].mxu0
  %v1343 = vadd.f32 0.0, %v1342
  %v1344 = vpop.f32.mrb[0].mxu0
  %v1345 = vpop.f32.mrb[0].mxu0
  %v1346 = vpop.f32.mrb[0].mxu0
  %1347 = vdwg.mxu0
  %v1349 = vrot.slane %v1343, 6
  %v1351 = vadd.f32 %v241, %v1349
  %v1352 = vxor.u32 %v1351, 2147483648
  %v1353 = vmul.f32 %v1352, 1.442695
  %v1354 = vpow.pop %v1353
  %v1355 = vadd.f32 %v1354, 1.0
  %v1356 = vrcp.pop %v1355
  %v1357 = vmul.f32 1.0, %v1356
  %v1358 = vadd.f32 %v1343, %v873
  %v1360 = vrot.slane %v1358, 6
  %1361 = vrot.lane.b32.xlu0 %v1360, 64
  %v1362 = vpop.permute.xlu0 %1361
  %v1364 = vmul.f32 %v1357, %v1362
  %1366 = vrot.lane.b32.xlu0 %v1364, 64
  %v1367 = vpop.permute.xlu0 %1366
  %v1369 = vadd.f32 %v241, %v1367
  %v1370 = vtanh.pop %v1369
  %v1371 = vsub.f32 1.0, %v1357
  %1373 = vrot.lane.b32.xlu0 %v1370, 96
  %v1374 = vpop.permute.xlu0 %1373
  %v1376 = vmul.f32 %v1371, %v1374
  %v1378 = vrot.slane %v1284, 6
  %v1380 = vmul.f32 %v1357, %v1378
  %v1381 = vadd.f32 %v1376, %v1380
  %vm1382 = vcmp.eq.s32.totalorder %v810, 10
  %vm1383 = vcmp.eq.s32.totalorder %v811, 10
  %v1384 = vlaneseq
  %v1385 = vshrl.u32 %v1384, 7
  %v1386 = vsub.s32 2, %v1385
  %v1387 = vrot.slane %v1381, %v1386
  %v1388 = vsel %vm1382, %v1387, %v1299
  %v1389 = vsel %vm1383, %v1387, %v1300
  %vm1390 = vcmp.eq.s32.totalorder %v810, 11
  %vm1391 = vcmp.eq.s32.totalorder %v811, 11
  %v1392 = vlaneseq
  %v1393 = vshrl.u32 %v1392, 7
  %v1394 = vsub.s32 3, %v1393
  %v1395 = vrot.slane %v1381, %v1394
  %v1396 = vsel %vm1390, %v1395, %v1388
  %v1397 = vsel %vm1391, %v1395, %v1389
  %v1398 = vpack.c.bf16 %v1381, %v1381
  %v1400 = vrot.slane %v1398, 1
  %1401 = vrot.lane.b32.xlu0 %v1400, 96
  %v1402 = vpop.permute.xlu0 %1401
  %v1404 = vsel %vm244, %v1402, 0
  %1406 = vmatprep.subr.bf16.mxu0 0
  %1407 = vmatpush1.bf16.msra.mxu0 %v39
  %1408 = vmatprep.subr.bf16.mxu0 0
  %1409 = vmatpush1.bf16.msra.mxu0 %v40
  %1410 = vmatprep.subr.bf16.mxu0 0
  %1411 = vmatpush1.bf16.msra.mxu0 0
  %1412 = vmatprep.subr.bf16.mxu0 0
  %1413 = vmatpush1.bf16.msra.mxu0 0
  %1414 = vmatprep.subr.bf16.mxu0 0
  %1415 = vmatpush1.bf16.msra.mxu0 0
  %1416 = vmatprep.subr.bf16.mxu0 0
  %1417 = vmatpush1.bf16.msra.mxu0 0
  %1418 = vmatprep.subr.bf16.mxu0 0
  %1419 = vmatpush1.bf16.msra.mxu0 0
  %1420 = vmatprep.subr.bf16.mxu0 0
  %1421 = vmatpush1.bf16.msra.mxu0 0
  %1422 = vmatprep.subr.bf16.mxu0 0
  %1423 = vmatpush1.bf16.msra.mxu0 0
  %1424 = vmatprep.subr.bf16.mxu0 0
  %1425 = vmatpush1.bf16.msra.mxu0 0
  %1426 = vmatprep.subr.bf16.mxu0 0
  %1427 = vmatpush1.bf16.msra.mxu0 0
  %1428 = vmatprep.subr.bf16.mxu0 0
  %1429 = vmatpush1.bf16.msra.mxu0 0
  %1430 = vmatprep.subr.bf16.mxu0 0
  %1431 = vmatpush1.bf16.msra.mxu0 0
  %1432 = vmatprep.subr.bf16.mxu0 0
  %1433 = vmatpush1.bf16.msra.mxu0 0
  %1434 = vmatprep.subr.bf16.mxu0 0
  %1435 = vmatpush1.bf16.msra.mxu0 0
  %1436 = vmatprep.subr.bf16.mxu0 0
  %1437 = vmatpush1.bf16.msra.mxu0 0
  %1438 = vmatprep.mubr.bf16.mxu0 0
  %1439 = vmatmul.mubr.bf16.gmra.mrb[0].mxu0 %v1404
  %v1440 = vpop.f32.mrb[0].mxu0
  %v1441 = vadd.f32 0.0, %v1440
  %v1442 = vpop.f32.mrb[0].mxu0
  %v1443 = vpop.f32.mrb[0].mxu0
  %v1444 = vpop.f32.mrb[0].mxu0
  %1445 = vdwg.mxu0
  %v1447 = vrot.slane %v1441, 4
  %v1449 = vadd.f32 %v241, %v1447
  %v1450 = vxor.u32 %v1449, 2147483648
  %v1451 = vmul.f32 %v1450, 1.442695
  %v1452 = vpow.pop %v1451
  %v1453 = vadd.f32 %v1452, 1.0
  %v1454 = vrcp.pop %v1453
  %v1455 = vmul.f32 1.0, %v1454
  %v1456 = vadd.f32 %v1441, %v873
  %v1458 = vrot.slane %v1456, 4
  %1459 = vrot.lane.b32.xlu0 %v1458, 64
  %v1460 = vpop.permute.xlu0 %1459
  %v1462 = vmul.f32 %v1455, %v1460
  %1464 = vrot.lane.b32.xlu0 %v1462, 64
  %v1465 = vpop.permute.xlu0 %1464
  %v1467 = vadd.f32 %v241, %v1465
  %v1468 = vtanh.pop %v1467
  %v1469 = vsub.f32 1.0, %v1455
  %1471 = vrot.lane.b32.xlu0 %v1468, 96
  %v1472 = vpop.permute.xlu0 %1471
  %v1474 = vmul.f32 %v1469, %v1472
  %v1476 = vrot.slane %v1381, 6
  %v1478 = vmul.f32 %v1455, %v1476
  %v1479 = vadd.f32 %v1474, %v1478
  %vm1480 = vcmp.eq.s32.totalorder %v810, 12
  %vm1481 = vcmp.eq.s32.totalorder %v811, 12
  %v1482 = vlaneseq
  %v1483 = vshrl.u32 %v1482, 7
  %v1484 = vsub.s32 4, %v1483
  %v1485 = vrot.slane %v1479, %v1484
  %v1486 = vsel %vm1480, %v1485, %v1396
  %v1487 = vsel %vm1481, %v1485, %v1397
  %vm1488 = vcmp.eq.s32.totalorder %v810, 13
  %vm1489 = vcmp.eq.s32.totalorder %v811, 13
  %v1490 = vlaneseq
  %v1491 = vshrl.u32 %v1490, 7
  %v1492 = vsub.s32 5, %v1491
  %v1493 = vrot.slane %v1479, %v1492
  %v1494 = vsel %vm1488, %v1493, %v1486
  %v1495 = vsel %vm1489, %v1493, %v1487
  %v1496 = vlaneseq
  %v1497 = vshrl.u32 %v1496, 7
  %v1498 = vsub.s32 4, %v1497
  %v1499 = vrot.slane %v45, %v1498
  %1502 = vrot.lane.b32.xlu0 %v1494, 96
  %v1503 = vpop.permute.xlu0 %1502
  %1504 = vrot.lane.b32.xlu0 %v1495, 96
  %v1505 = vpop.permute.xlu0 %1504
  %v1506 = vsel %vm244, %v1503, 0
  %v1508 = vsel %vm244, %v1505, 0
  %1510 = vmatprep.subr.mxu0 0.0
  %1511 = vmatpush1.msra.mxu0 %v41
  %1512 = vmatprep.subr.mxu0 0.0
  %1513 = vmatpush1.msra.mxu0 %v42
  %1514 = vmatprep.subr.mxu0 0.0
  %1515 = vmatpush1.msra.mxu0 %v43
  %1516 = vmatprep.subr.mxu0 0.0
  %1517 = vmatpush1.msra.mxu0 %v44
  %1518 = vmatprep.subr.mxu0 0.0
  %1519 = vmatpush1.msra.mxu0 0.0
  %1520 = vmatprep.subr.mxu0 0.0
  %1521 = vmatpush1.msra.mxu0 0.0
  %1522 = vmatprep.subr.mxu0 0.0
  %1523 = vmatpush1.msra.mxu0 0.0
  %1524 = vmatprep.subr.mxu0 0.0
  %1525 = vmatpush1.msra.mxu0 0.0
  %1526 = vmatprep.subr.mxu0 0.0
  %1527 = vmatpush1.msra.mxu0 0.0
  %1528 = vmatprep.subr.mxu0 0.0
  %1529 = vmatpush1.msra.mxu0 0.0
  %1530 = vmatprep.subr.mxu0 0.0
  %1531 = vmatpush1.msra.mxu0 0.0
  %1532 = vmatprep.subr.mxu0 0.0
  %1533 = vmatpush1.msra.mxu0 0.0
  %1534 = vmatprep.subr.mxu0 0.0
  %1535 = vmatpush1.msra.mxu0 0.0
  %1536 = vmatprep.subr.mxu0 0.0
  %1537 = vmatpush1.msra.mxu0 0.0
  %1538 = vmatprep.subr.mxu0 0.0
  %1539 = vmatpush1.msra.mxu0 0.0
  %1540 = vmatprep.subr.mxu0 0.0
  %1541 = vmatpush1.msra.mxu0 0.0
  %1542 = vmatprep.subr.mxu0 0.0
  %1543 = vmatpush1.msra.mxu0 0.0
  %1544 = vmatprep.subr.mxu0 0.0
  %1545 = vmatpush1.msra.mxu0 0.0
  %1546 = vmatprep.subr.mxu0 0.0
  %1547 = vmatpush1.msra.mxu0 0.0
  %1548 = vmatprep.subr.mxu0 0.0
  %1549 = vmatpush1.msra.mxu0 0.0
  %1550 = vmatprep.subr.mxu0 0.0
  %1551 = vmatpush1.msra.mxu0 0.0
  %1552 = vmatprep.subr.mxu0 0.0
  %1553 = vmatpush1.msra.mxu0 0.0
  %1554 = vmatprep.subr.mxu0 0.0
  %1555 = vmatpush1.msra.mxu0 0.0
  %1556 = vmatprep.subr.mxu0 0.0
  %1557 = vmatpush1.msra.mxu0 0.0
  %1558 = vmatprep.subr.mxu0 0.0
  %1559 = vmatpush1.msra.mxu0 0.0
  %1560 = vmatprep.subr.mxu0 0.0
  %1561 = vmatpush1.msra.mxu0 0.0
  %1562 = vmatprep.subr.mxu0 0.0
  %1563 = vmatpush1.msra.mxu0 0.0
  %1564 = vmatprep.subr.mxu0 0.0
  %1565 = vmatpush1.msra.mxu0 0.0
  %1566 = vmatprep.subr.mxu0 0.0
  %1567 = vmatpush1.msra.mxu0 0.0
  %1568 = vmatprep.subr.mxu0 0.0
  %1569 = vmatpush1.msra.mxu0 0.0
  %1570 = vmatprep.subr.mxu0 0.0
  %1571 = vmatpush1.msra.mxu0 0.0
  %1572 = vmatprep.subr.mxu0 0.0
  %1573 = vmatpush1.msra.mxu0 0.0
  %1574 = vmatprep.mubr.f32.mxu0 0.0
  %1575 = vmatmul.mubr.f32.gmra.mrb[0].mxu0 %v1506
  %v1576 = vpop.f32.mrb[0].mxu0
  %v1577 = vadd.f32 %v1499, %v1576
  %v1578 = vpop.f32.mrb[0].mxu0
  %1579 = vmatprep.mubr.f32.mxu0 0.0
  %1580 = vmatmul.mubr.f32.gmra.mrb[0].mxu0 %v1508
  %v1581 = vpop.f32.mrb[0].mxu0
  %v1582 = vadd.f32 %v1499, %v1581
  %v1583 = vpop.f32.mrb[0].mxu0
  %1584 = vdwg.mxu0
  %1585 = vst [vmem:[%s2] sm:$0xff] %v1577
  %1586 = vst [vmem:[%s2 + $0x8] sm:$0xff] %v1582
  // Predicated region
  $region10: #{seq2seq_forward.1} parent=0 // pred_check
    _
  $region11: #{seq2seq_forward.1} parent=0 // pred_check_branch
    %1588 = sbr.rel (0) target = $region13
  $region12: #{seq2seq_forward.1} parent=0 // pred_region
    _
  $region13: #{seq2seq_forward.1} parent=0 // pred_fallthru
    _
  // Predicated region
  $region14: #{seq2seq_forward.1} parent=0 // pred_check
    _
  $region15: #{seq2seq_forward.1} parent=0 // pred_check_branch
    %1590 = sbr.rel (0) target = $region17
  $region16: #{seq2seq_forward.1} parent=0 // pred_region
    _
  $region17: #{seq2seq_forward.1} parent=0 // pred_fallthru
    _

</llo_original>
